<compile_context>
chip_gen: v6e
topology: v6e:2x2x1
jax: 0.10.0
libtpu: 0.0.40
codegen_flags: <defaults>
</compile_context>

<pallas_src>
import functools

import jax
import jax.numpy as jnp
from jax import lax
from jax.experimental import pallas as pl
from jax.experimental.pallas import tpu as pltpu

BN_EPS = 1e-5


# --------------------- shared tile compute: maxpool(2,2) + conv(3x3,s2,p1) --------------------
def _pool_and_conv(planes_ref, w_ref, r0, *, C_in, Th, Wo):
    """Compute the pool and conv channel groups for one row tile.

    planes_ref: (1, 4, C_in, Ho+1, Wo+1) parity planes of the zero-padded image;
                plane q = 2*r + s holds xp[2i + r, 2j + s] (r/s = row/col parity).
    w_ref     : (9, 16-C_in, C_in) conv weight, leading index = kh*3 + kw.
    Returns (pool, conv): (C_in, Th*Wo) and (16-C_in, Th*Wo), both float32.
    """
    M = Th * Wo

    def tap(q, dh, dw):
        # (C_in, Th, Wo) window of parity plane q at row offset dh, col offset dw.
        return planes_ref[0, q, :, pl.ds(r0 + dh, Th), pl.ds(dw, Wo)]

    # MaxPool2d(2, 2): the 4 window pixels are the 4 parity planes at padded offset (+1, +1).
    pool = jnp.maximum(jnp.maximum(tap(3, 0, 0), tap(2, 0, 1)),
                       jnp.maximum(tap(1, 1, 0), tap(0, 1, 1)))
    pool = pool.reshape(C_in, M).astype(jnp.float32)

    # Conv2d(C_in -> 16-C_in, 3, stride=2, padding=1): 9 accumulating MXU matmuls (K=C_in)
    # -- avoids materializing the (9*C_in, M) im2col block through the store slot.
    # NOTE: conv bias is dropped -- training-mode BatchNorm mean subtraction cancels it.
    conv = None
    for kh in range(3):
        for kw in range(3):
            q = 2 * (kh % 2) + (kw % 2)
            t = tap(q, kh // 2, kw // 2).reshape(C_in, M)
            d = jnp.dot(w_ref[kh * 3 + kw], t, preferred_element_type=jnp.float32)
            conv = d if conv is None else conv + d
    return pool, conv


# ---------------------- kernel A: per-image BatchNorm partial statistics ----------------------
def _stats_kernel(planes_ref, w_ref, stats_ref, *, C_in, Th, Wo):
    # stats_ref: (1, 16, 2) per-image [sum, sum_sq] per channel, accumulated over row tiles
    # (output block index is independent of t -> VMEM-resident accumulator, one HBM write).
    t = pl.program_id(1)
    r0 = t * Th
    if Th % 8 == 0:
        r0 = pl.multiple_of(r0, 8)

    pool, conv = _pool_and_conv(planes_ref, w_ref, r0, C_in=C_in, Th=Th, Wo=Wo)

    @pl.when(t == 0)
    def _():
        stats_ref[...] = jnp.zeros_like(stats_ref)

    # NOTE: plain sum / sum-of-squares in f32; for very large N*H*W a centered (Welford)
    # merge would be more robust against cancellation in var = E[y^2] - E[y]^2.
    s1 = jnp.concatenate([jnp.sum(pool, axis=1, keepdims=True),
                          jnp.sum(conv, axis=1, keepdims=True)], axis=0)          # (16, 1)
    s2 = jnp.concatenate([jnp.sum(pool * pool, axis=1, keepdims=True),
                          jnp.sum(conv * conv, axis=1, keepdims=True)], axis=0)   # (16, 1)
    stats_ref[0] += jnp.concatenate([s1, s2], axis=1)                             # (16, 2)


# -------------- kernel B: recompute pool+conv, apply BN scale/shift + PReLU, store -------------
def _out_kernel(planes_ref, w_ref, p_ref, o_ref, *, C_in, Th, Wo):
    # p_ref: (16, 3) packed columns [scale, shift, alpha];  o_ref: (1, 16, Th*Wo) final output.
    t = pl.program_id(1)
    r0 = t * Th
    if Th % 8 == 0:
        r0 = pl.multiple_of(r0, 8)

    pool, conv = _pool_and_conv(planes_ref, w_ref, r0, C_in=C_in, Th=Th, Wo=Wo)

    # Two direct sub-ref stores (no (16, M) concatenate / double-materialization).
    zp = pool * p_ref[:C_in, 0:1] + p_ref[:C_in, 1:2]
    o_ref[0, :C_in, :] = jnp.where(zp >= 0.0, zp, p_ref[:C_in, 2:3] * zp)
    zc = conv * p_ref[C_in:, 0:1] + p_ref[C_in:, 1:2]
    o_ref[0, C_in:, :] = jnp.where(zc >= 0.0, zc, p_ref[C_in:, 2:3] * zc)


# ------------------------------------------ wrapper -------------------------------------------
def _pick_row_tile(Ho, Wo, target_pixels=16384):
    """Largest divisor Th of Ho giving a lane-aligned, VMEM-friendly Th*Wo pixel tile."""
    if Ho * Wo <= target_pixels:
        return Ho
    divs = [t for t in range(1, Ho + 1) if Ho % t == 0 and t * Wo <= target_pixels]
    lane_ok = [t for t in divs if (t * Wo) % 128 == 0]
    pref = [t for t in lane_ok if t % 8 == 0]          # 8-aligned sublane row starts
    for cands in (pref, lane_ok):
        if cands:
            return max(cands)
    return Ho   # single tile per image (block == full array, always a legal BlockSpec)


def _vmem_limit_bytes():
    # Adapt to the part: v7x has 64 MiB VMEM/TC (leave Mosaic scratch headroom),
    # v5e/v6e have 128 MiB (can raise toward ~100 MiB).
    try:
        cap = pltpu.get_tpu_info().vmem_capacity_bytes
    except Exception:
        cap = 128 * 1024 * 1024
    return int(max(32 * 1024 * 1024, min(cap - 16 * 1024 * 1024, 100 * 1024 * 1024)))


def initial_block(x_nchw, params, *, compute_dtype=jnp.float32):
    N, C_in, H, W = x_nchw.shape
    # TODO(synk): MaxPool2d ceil_mode padding for odd H/W is not handled (even H/W only).
    assert H % 2 == 0 and W % 2 == 0, "even spatial dims assumed (ceil_mode == floor)"
    C_conv = 16 - C_in
    Ho, Wo = H // 2, W // 2
    HW = Ho * Wo
    Th = _pick_row_tile(Ho, Wo)
    T = Ho // Th

    # Layout-only glue (~1x input): zero-pad, then 2x2 space-to-depth into 4 parity planes.
    # compute_dtype=jnp.bfloat16 halves this (the only repeated) HBM read and the per-image
    # VMEM residency; the MXU takes bf16 natively and still accumulates in f32.
    x = x_nchw.astype(compute_dtype)
    xp = jnp.pad(x, ((0, 0), (0, 0), (1, 1), (1, 1)))
    planes = (xp.reshape(N, C_in, Ho + 1, 2, Wo + 1, 2)
                .transpose(0, 3, 5, 1, 2, 4)
                .reshape(N, 4, C_in, Ho + 1, Wo + 1))

    # Conv weight (Cout, Cin, 3, 3) -> (9, Cout, Cin), leading index kh*3 + kw.
    # conv bias is intentionally NOT used: training-mode BN mean subtraction cancels it.
    w_split = (jnp.transpose(params["conv_w"], (2, 3, 0, 1))
                  .reshape(9, C_conv, C_in).astype(compute_dtype))

    vmem_limit = _vmem_limit_bytes()
    planes_spec = pl.BlockSpec((1, 4, C_in, Ho + 1, Wo + 1), lambda n, t: (n, 0, 0, 0, 0))
    w_spec = pl.BlockSpec((9, C_conv, C_in), lambda n, t: (0, 0, 0))

    # ---- pass 1: per-image BN partial statistics (no 16-channel activation hits HBM) ----
    stats = pl.pallas_call(
        functools.partial(_stats_kernel, C_in=C_in, Th=Th, Wo=Wo),
        out_shape=jax.ShapeDtypeStruct((N, 16, 2), jnp.float32),
        grid_spec=pltpu.PrefetchScalarGridSpec(
            num_scalar_prefetch=0,
            grid=(N, T),
            in_specs=[planes_spec, w_spec],
            out_specs=pl.BlockSpec((1, 16, 2), lambda n, t: (n, 0, 0)),
        ),
        compiler_params=pltpu.CompilerParams(
            dimension_semantics=("parallel", "arbitrary"),   # t is an accumulator axis
            vmem_limit_bytes=vmem_limit,
        ),
    )(planes, w_split)

    # Tiny (N, 16, 2) reduction -> folded BN scale/shift (training-mode batch statistics).
    ssum = jnp.sum(stats, axis=0)                              # (16, 2)
    cnt = jnp.float32(N * HW)
    mean = ssum[:, 0] / cnt
    var = ssum[:, 1] / cnt - mean * mean                       # biased, like PyTorch BN
    scale = params["bn_gamma"].astype(jnp.float32) * lax.rsqrt(var + BN_EPS)
    shift = params["bn_beta"].astype(jnp.float32) - mean * scale
    packed = jnp.stack(
        [scale, shift, params["prelu_alpha"].astype(jnp.float32)], axis=1)        # (16, 3)

    # ---- pass 2: recompute pool+conv, apply BN+PReLU, write the final output directly ----
    # Megacore: split on images when possible so each image's planes are read by one core.
    sem = ("parallel", "arbitrary") if N >= 2 else ("arbitrary", "parallel")
    out = pl.pallas_call(
        functools.partial(_out_kernel, C_in=C_in, Th=Th, Wo=Wo),
        out_shape=jax.ShapeDtypeStruct((N, 16, HW), jnp.float32),
        grid_spec=pltpu.PrefetchScalarGridSpec(
            num_scalar_prefetch=0,
            grid=(N, T),
            in_specs=[planes_spec, w_spec,
                      pl.BlockSpec((16, 3), lambda n, t: (0, 0))],
            out_specs=pl.BlockSpec((1, 16, Th * Wo), lambda n, t: (n, 0, t)),
        ),
        compiler_params=pltpu.CompilerParams(
            dimension_semantics=sem,
            vmem_limit_bytes=vmem_limit,
        ),
    )(planes, w_split, packed)

    # (N, 16, Ho*Wo) is already channels-first; reshape to NCHW is free.
    return out.reshape(N, 16, Ho, Wo)


# --------------------------------- pure-JAX reference -----------------------------------------
def _reference(x, params):
    pool = lax.reduce_window(x, -jnp.inf, lax.max, (1, 1, 2, 2), (1, 1, 2, 2), "VALID")
    conv = lax.conv_general_dilated(x, params["conv_w"], (2, 2), ((1, 1), (1, 1)),
                                    dimension_numbers=("NCHW", "OIHW", "NCHW"))
    conv = conv + params["conv_b"][None, :, None, None]
    y = jnp.concatenate([pool, conv], axis=1)
    mean = jnp.mean(y, axis=(0, 2, 3), keepdims=True)
    var = jnp.mean(jnp.square(y - mean), axis=(0, 2, 3), keepdims=True)
    z = ((y - mean) / jnp.sqrt(var + BN_EPS)
         * params["bn_gamma"][None, :, None, None] + params["bn_beta"][None, :, None, None])
    a = params["prelu_alpha"][None, :, None, None]
    return jnp.where(z >= 0, z, a * z)


if __name__ == "__main__":
    N, C_in, H, W = 2, 4, 16, 16
    C_conv = 16 - C_in

    key = jax.random.PRNGKey(0)
    k0, k1, k2, k3, k4 = jax.random.split(key, 5)

    x = jax.random.normal(k0, (N, C_in, H, W), jnp.float32)
    params = {
        "conv_w": jax.random.normal(k1, (C_conv, C_in, 3, 3), jnp.float32) * 0.1,
        "conv_b": jax.random.normal(k2, (C_conv,), jnp.float32) * 0.1,
        "bn_gamma": jax.random.uniform(k3, (16,), jnp.float32, 0.5, 1.5),
        "bn_beta": jax.random.normal(k4, (16,), jnp.float32) * 0.1,
        "prelu_alpha": jnp.full((16,), 0.25, jnp.float32),  # PyTorch PReLU default init
    }

    out = jax.block_until_ready(initial_block(x, params))
    ref = _reference(x, params)

    assert out.shape == (N, 16, H // 2, W // 2), out.shape
    assert jnp.allclose(out, ref, rtol=1e-3, atol=1e-3), float(jnp.max(jnp.abs(out - ref)))
    print("KERNEL_OK")
</pallas_src>

<mosaic_0001>
module attributes {stable_mosaic.version = 11 : i64} {
  func.func @_stats_kernel(%arg0: i32, %arg1: i32, %arg2: memref<1x4x4x9x9xf32, #tpu.memory_space<vmem>>, %arg3: memref<9x12x4xf32, #tpu.memory_space<vmem>>, %arg4: memref<1x16x2xf32, #tpu.memory_space<vmem>>) attributes {dimension_semantics = [#tpu.dimension_semantics<parallel>, #tpu.dimension_semantics<arbitrary>], iteration_bounds = array<i64: 2, 1>, scalar_prefetch = 0 : i64, scratch_operands = 0 : i64, tpu.core_type = #tpu.core_type<tc>, window_params = [{transform_indices = @transform_0, window_bounds = array<i64: 1, 4, 4, 9, 9>}, {pipeline_mode = #tpu.pipeline_mode<synchronous>, transform_indices = @transform_1, window_bounds = array<i64: 9, 12, 4>}, {transform_indices = @transform_2, window_bounds = array<i64: 1, 16, 2>}]} {
    %c8_i32 = arith.constant 8 : i32
    %0 = arith.muli %arg1, %c8_i32 : i32
    %1 = tpu.assume_multiple %0, 8 : i32
    %c0_i32 = arith.constant 0 : i32
    %2 = arith.addi %1, %c0_i32 : i32
    %c0 = arith.constant 0 : index
    %c3 = arith.constant 3 : index
    %c0_0 = arith.constant 0 : index
    %3 = arith.index_cast %2 : i32 to index
    %c0_1 = arith.constant 0 : index
    %4 = vector.load %arg2[%c0, %c3, %c0_0, %3, %c0_1] : memref<1x4x4x9x9xf32, #tpu.memory_space<vmem>>, vector<1x1x4x8x8xf32>
    %5 = vector.shape_cast %4 : vector<1x1x4x8x8xf32> to vector<4x8x8xf32>
    %c0_i32_2 = arith.constant 0 : i32
    %6 = arith.addi %1, %c0_i32_2 : i32
    %c0_3 = arith.constant 0 : index
    %c2 = arith.constant 2 : index
    %c0_4 = arith.constant 0 : index
    %7 = arith.index_cast %6 : i32 to index
    %c1 = arith.constant 1 : index
    %8 = vector.load %arg2[%c0_3, %c2, %c0_4, %7, %c1] : memref<1x4x4x9x9xf32, #tpu.memory_space<vmem>>, vector<1x1x4x8x8xf32>
    %9 = vector.shape_cast %8 : vector<1x1x4x8x8xf32> to vector<4x8x8xf32>
    %10 = arith.maximumf %5, %9 : vector<4x8x8xf32>
    %c1_i32 = arith.constant 1 : i32
    %11 = arith.addi %1, %c1_i32 : i32
    %c0_5 = arith.constant 0 : index
    %c1_6 = arith.constant 1 : index
    %c0_7 = arith.constant 0 : index
    %12 = arith.index_cast %11 : i32 to index
    %c0_8 = arith.constant 0 : index
    %13 = vector.load %arg2[%c0_5, %c1_6, %c0_7, %12, %c0_8] : memref<1x4x4x9x9xf32, #tpu.memory_space<vmem>>, vector<1x1x4x8x8xf32>
    %14 = vector.shape_cast %13 : vector<1x1x4x8x8xf32> to vector<4x8x8xf32>
    %c1_i32_9 = arith.constant 1 : i32
    %15 = arith.addi %1, %c1_i32_9 : i32
    %c0_10 = arith.constant 0 : index
    %c0_11 = arith.constant 0 : index
    %c0_12 = arith.constant 0 : index
    %16 = arith.index_cast %15 : i32 to index
    %c1_13 = arith.constant 1 : index
    %17 = vector.load %arg2[%c0_10, %c0_11, %c0_12, %16, %c1_13] : memref<1x4x4x9x9xf32, #tpu.memory_space<vmem>>, vector<1x1x4x8x8xf32>
    %18 = vector.shape_cast %17 : vector<1x1x4x8x8xf32> to vector<4x8x8xf32>
    %19 = arith.maximumf %14, %18 : vector<4x8x8xf32>
    %20 = arith.maximumf %10, %19 : vector<4x8x8xf32>
    %21 = vector.shape_cast %20 : vector<4x8x8xf32> to vector<4x64xf32>
    %c0_i32_14 = arith.constant 0 : i32
    %22 = arith.addi %1, %c0_i32_14 : i32
    %c0_15 = arith.constant 0 : index
    %c0_16 = arith.constant 0 : index
    %c0_17 = arith.constant 0 : index
    %23 = arith.index_cast %22 : i32 to index
    %c0_18 = arith.constant 0 : index
    %24 = vector.load %arg2[%c0_15, %c0_16, %c0_17, %23, %c0_18] : memref<1x4x4x9x9xf32, #tpu.memory_space<vmem>>, vector<1x1x4x8x8xf32>
    %25 = vector.shape_cast %24 : vector<1x1x4x8x8xf32> to vector<4x8x8xf32>
    %26 = vector.shape_cast %25 : vector<4x8x8xf32> to vector<4x64xf32>
    %c0_19 = arith.constant 0 : index
    %c0_20 = arith.constant 0 : index
    %c0_21 = arith.constant 0 : index
    %27 = vector.load %arg3[%c0_19, %c0_20, %c0_21] : memref<9x12x4xf32, #tpu.memory_space<vmem>>, vector<1x12x4xf32>
    %28 = vector.shape_cast %27 : vector<1x12x4xf32> to vector<12x4xf32>
    %cst = arith.constant dense<0.000000e+00> : vector<12x64xf32>
    %29 = tpu.matmul %28, %26, %cst {dimension_numbers = #tpu.dot_dimension_numbers<[1], [0], [0], [1], [0, 0, 1, 1], [], []>} : vector<12x4xf32>, vector<4x64xf32>, vector<12x64xf32> -> vector<12x64xf32>
    %c0_i32_22 = arith.constant 0 : i32
    %30 = arith.addi %1, %c0_i32_22 : i32
    %c0_23 = arith.constant 0 : index
    %c1_24 = arith.constant 1 : index
    %c0_25 = arith.constant 0 : index
    %31 = arith.index_cast %30 : i32 to index
    %c0_26 = arith.constant 0 : index
    %32 = vector.load %arg2[%c0_23, %c1_24, %c0_25, %31, %c0_26] : memref<1x4x4x9x9xf32, #tpu.memory_space<vmem>>, vector<1x1x4x8x8xf32>
    %33 = vector.shape_cast %32 : vector<1x1x4x8x8xf32> to vector<4x8x8xf32>
    %34 = vector.shape_cast %33 : vector<4x8x8xf32> to vector<4x64xf32>
    %c1_27 = arith.constant 1 : index
    %c0_28 = arith.constant 0 : index
    %c0_29 = arith.constant 0 : index
    %35 = vector.load %arg3[%c1_27, %c0_28, %c0_29] : memref<9x12x4xf32, #tpu.memory_space<vmem>>, vector<1x12x4xf32>
    %36 = vector.shape_cast %35 : vector<1x12x4xf32> to vector<12x4xf32>
    %cst_30 = arith.constant dense<0.000000e+00> : vector<12x64xf32>
    %37 = tpu.matmul %36, %34, %cst_30 {dimension_numbers = #tpu.dot_dimension_numbers<[1], [0], [0], [1], [0, 0, 1, 1], [], []>} : vector<12x4xf32>, vector<4x64xf32>, vector<12x64xf32> -> vector<12x64xf32>
    %38 = arith.addf %29, %37 : vector<12x64xf32>
    %c0_i32_31 = arith.constant 0 : i32
    %39 = arith.addi %1, %c0_i32_31 : i32
    %c0_32 = arith.constant 0 : index
    %c0_33 = arith.constant 0 : index
    %c0_34 = arith.constant 0 : index
    %40 = arith.index_cast %39 : i32 to index
    %c1_35 = arith.constant 1 : index
    %41 = vector.load %arg2[%c0_32, %c0_33, %c0_34, %40, %c1_35] : memref<1x4x4x9x9xf32, #tpu.memory_space<vmem>>, vector<1x1x4x8x8xf32>
    %42 = vector.shape_cast %41 : vector<1x1x4x8x8xf32> to vector<4x8x8xf32>
    %43 = vector.shape_cast %42 : vector<4x8x8xf32> to vector<4x64xf32>
    %c2_36 = arith.constant 2 : index
    %c0_37 = arith.constant 0 : index
    %c0_38 = arith.constant 0 : index
    %44 = vector.load %arg3[%c2_36, %c0_37, %c0_38] : memref<9x12x4xf32, #tpu.memory_space<vmem>>, vector<1x12x4xf32>
    %45 = vector.shape_cast %44 : vector<1x12x4xf32> to vector<12x4xf32>
    %cst_39 = arith.constant dense<0.000000e+00> : vector<12x64xf32>
    %46 = tpu.matmul %45, %43, %cst_39 {dimension_numbers = #tpu.dot_dimension_numbers<[1], [0], [0], [1], [0, 0, 1, 1], [], []>} : vector<12x4xf32>, vector<4x64xf32>, vector<12x64xf32> -> vector<12x64xf32>
    %47 = arith.addf %38, %46 : vector<12x64xf32>
    %c0_i32_40 = arith.constant 0 : i32
    %48 = arith.addi %1, %c0_i32_40 : i32
    %c0_41 = arith.constant 0 : index
    %c2_42 = arith.constant 2 : index
    %c0_43 = arith.constant 0 : index
    %49 = arith.index_cast %48 : i32 to index
    %c0_44 = arith.constant 0 : index
    %50 = vector.load %arg2[%c0_41, %c2_42, %c0_43, %49, %c0_44] : memref<1x4x4x9x9xf32, #tpu.memory_space<vmem>>, vector<1x1x4x8x8xf32>
    %51 = vector.shape_cast %50 : vector<1x1x4x8x8xf32> to vector<4x8x8xf32>
    %52 = vector.shape_cast %51 : vector<4x8x8xf32> to vector<4x64xf32>
    %c3_45 = arith.constant 3 : index
    %c0_46 = arith.constant 0 : index
    %c0_47 = arith.constant 0 : index
    %53 = vector.load %arg3[%c3_45, %c0_46, %c0_47] : memref<9x12x4xf32, #tpu.memory_space<vmem>>, vector<1x12x4xf32>
    %54 = vector.shape_cast %53 : vector<1x12x4xf32> to vector<12x4xf32>
    %cst_48 = arith.constant dense<0.000000e+00> : vector<12x64xf32>
    %55 = tpu.matmul %54, %52, %cst_48 {dimension_numbers = #tpu.dot_dimension_numbers<[1], [0], [0], [1], [0, 0, 1, 1], [], []>} : vector<12x4xf32>, vector<4x64xf32>, vector<12x64xf32> -> vector<12x64xf32>
    %56 = arith.addf %47, %55 : vector<12x64xf32>
    %c0_i32_49 = arith.constant 0 : i32
    %57 = arith.addi %1, %c0_i32_49 : i32
    %c0_50 = arith.constant 0 : index
    %c3_51 = arith.constant 3 : index
    %c0_52 = arith.constant 0 : index
    %58 = arith.index_cast %57 : i32 to index
    %c0_53 = arith.constant 0 : index
    %59 = vector.load %arg2[%c0_50, %c3_51, %c0_52, %58, %c0_53] : memref<1x4x4x9x9xf32, #tpu.memory_space<vmem>>, vector<1x1x4x8x8xf32>
    %60 = vector.shape_cast %59 : vector<1x1x4x8x8xf32> to vector<4x8x8xf32>
    %61 = vector.shape_cast %60 : vector<4x8x8xf32> to vector<4x64xf32>
    %c4 = arith.constant 4 : index
    %c0_54 = arith.constant 0 : index
    %c0_55 = arith.constant 0 : index
    %62 = vector.load %arg3[%c4, %c0_54, %c0_55] : memref<9x12x4xf32, #tpu.memory_space<vmem>>, vector<1x12x4xf32>
    %63 = vector.shape_cast %62 : vector<1x12x4xf32> to vector<12x4xf32>
    %cst_56 = arith.constant dense<0.000000e+00> : vector<12x64xf32>
    %64 = tpu.matmul %63, %61, %cst_56 {dimension_numbers = #tpu.dot_dimension_numbers<[1], [0], [0], [1], [0, 0, 1, 1], [], []>} : vector<12x4xf32>, vector<4x64xf32>, vector<12x64xf32> -> vector<12x64xf32>
    %65 = arith.addf %56, %64 : vector<12x64xf32>
    %c0_i32_57 = arith.constant 0 : i32
    %66 = arith.addi %1, %c0_i32_57 : i32
    %c0_58 = arith.constant 0 : index
    %c2_59 = arith.constant 2 : index
    %c0_60 = arith.constant 0 : index
    %67 = arith.index_cast %66 : i32 to index
    %c1_61 = arith.constant 1 : index
    %68 = vector.load %arg2[%c0_58, %c2_59, %c0_60, %67, %c1_61] : memref<1x4x4x9x9xf32, #tpu.memory_space<vmem>>, vector<1x1x4x8x8xf32>
    %69 = vector.shape_cast %68 : vector<1x1x4x8x8xf32> to vector<4x8x8xf32>
    %70 = vector.shape_cast %69 : vector<4x8x8xf32> to vector<4x64xf32>
    %c5 = arith.constant 5 : index
    %c0_62 = arith.constant 0 : index
    %c0_63 = arith.constant 0 : index
    %71 = vector.load %arg3[%c5, %c0_62, %c0_63] : memref<9x12x4xf32, #tpu.memory_space<vmem>>, vector<1x12x4xf32>
    %72 = vector.shape_cast %71 : vector<1x12x4xf32> to vector<12x4xf32>
    %cst_64 = arith.constant dense<0.000000e+00> : vector<12x64xf32>
    %73 = tpu.matmul %72, %70, %cst_64 {dimension_numbers = #tpu.dot_dimension_numbers<[1], [0], [0], [1], [0, 0, 1, 1], [], []>} : vector<12x4xf32>, vector<4x64xf32>, vector<12x64xf32> -> vector<12x64xf32>
    %74 = arith.addf %65, %73 : vector<12x64xf32>
    %c1_i32_65 = arith.constant 1 : i32
    %75 = arith.addi %1, %c1_i32_65 : i32
    %c0_66 = arith.constant 0 : index
    %c0_67 = arith.constant 0 : index
    %c0_68 = arith.constant 0 : index
    %76 = arith.index_cast %75 : i32 to index
    %c0_69 = arith.constant 0 : index
    %77 = vector.load %arg2[%c0_66, %c0_67, %c0_68, %76, %c0_69] : memref<1x4x4x9x9xf32, #tpu.memory_space<vmem>>, vector<1x1x4x8x8xf32>
    %78 = vector.shape_cast %77 : vector<1x1x4x8x8xf32> to vector<4x8x8xf32>
    %79 = vector.shape_cast %78 : vector<4x8x8xf32> to vector<4x64xf32>
    %c6 = arith.constant 6 : index
    %c0_70 = arith.constant 0 : index
    %c0_71 = arith.constant 0 : index
    %80 = vector.load %arg3[%c6, %c0_70, %c0_71] : memref<9x12x4xf32, #tpu.memory_space<vmem>>, vector<1x12x4xf32>
    %81 = vector.shape_cast %80 : vector<1x12x4xf32> to vector<12x4xf32>
    %cst_72 = arith.constant dense<0.000000e+00> : vector<12x64xf32>
    %82 = tpu.matmul %81, %79, %cst_72 {dimension_numbers = #tpu.dot_dimension_numbers<[1], [0], [0], [1], [0, 0, 1, 1], [], []>} : vector<12x4xf32>, vector<4x64xf32>, vector<12x64xf32> -> vector<12x64xf32>
    %83 = arith.addf %74, %82 : vector<12x64xf32>
    %c1_i32_73 = arith.constant 1 : i32
    %84 = arith.addi %1, %c1_i32_73 : i32
    %c0_74 = arith.constant 0 : index
    %c1_75 = arith.constant 1 : index
    %c0_76 = arith.constant 0 : index
    %85 = arith.index_cast %84 : i32 to index
    %c0_77 = arith.constant 0 : index
    %86 = vector.load %arg2[%c0_74, %c1_75, %c0_76, %85, %c0_77] : memref<1x4x4x9x9xf32, #tpu.memory_space<vmem>>, vector<1x1x4x8x8xf32>
    %87 = vector.shape_cast %86 : vector<1x1x4x8x8xf32> to vector<4x8x8xf32>
    %88 = vector.shape_cast %87 : vector<4x8x8xf32> to vector<4x64xf32>
    %c7 = arith.constant 7 : index
    %c0_78 = arith.constant 0 : index
    %c0_79 = arith.constant 0 : index
    %89 = vector.load %arg3[%c7, %c0_78, %c0_79] : memref<9x12x4xf32, #tpu.memory_space<vmem>>, vector<1x12x4xf32>
    %90 = vector.shape_cast %89 : vector<1x12x4xf32> to vector<12x4xf32>
    %cst_80 = arith.constant dense<0.000000e+00> : vector<12x64xf32>
    %91 = tpu.matmul %90, %88, %cst_80 {dimension_numbers = #tpu.dot_dimension_numbers<[1], [0], [0], [1], [0, 0, 1, 1], [], []>} : vector<12x4xf32>, vector<4x64xf32>, vector<12x64xf32> -> vector<12x64xf32>
    %92 = arith.addf %83, %91 : vector<12x64xf32>
    %c1_i32_81 = arith.constant 1 : i32
    %93 = arith.addi %1, %c1_i32_81 : i32
    %c0_82 = arith.constant 0 : index
    %c0_83 = arith.constant 0 : index
    %c0_84 = arith.constant 0 : index
    %94 = arith.index_cast %93 : i32 to index
    %c1_85 = arith.constant 1 : index
    %95 = vector.load %arg2[%c0_82, %c0_83, %c0_84, %94, %c1_85] : memref<1x4x4x9x9xf32, #tpu.memory_space<vmem>>, vector<1x1x4x8x8xf32>
    %96 = vector.shape_cast %95 : vector<1x1x4x8x8xf32> to vector<4x8x8xf32>
    %97 = vector.shape_cast %96 : vector<4x8x8xf32> to vector<4x64xf32>
    %c8 = arith.constant 8 : index
    %c0_86 = arith.constant 0 : index
    %c0_87 = arith.constant 0 : index
    %98 = vector.load %arg3[%c8, %c0_86, %c0_87] : memref<9x12x4xf32, #tpu.memory_space<vmem>>, vector<1x12x4xf32>
    %99 = vector.shape_cast %98 : vector<1x12x4xf32> to vector<12x4xf32>
    %cst_88 = arith.constant dense<0.000000e+00> : vector<12x64xf32>
    %100 = tpu.matmul %99, %97, %cst_88 {dimension_numbers = #tpu.dot_dimension_numbers<[1], [0], [0], [1], [0, 0, 1, 1], [], []>} : vector<12x4xf32>, vector<4x64xf32>, vector<12x64xf32> -> vector<12x64xf32>
    %101 = arith.addf %92, %100 : vector<12x64xf32>
    %c0_i32_89 = arith.constant 0 : i32
    %102 = arith.cmpi eq, %arg1, %c0_i32_89 : i32
    %103 = arith.extui %102 : i1 to i32
    %c0_i32_90 = arith.constant 0 : i32
    %104 = arith.cmpi ne, %103, %c0_i32_90 : i32
    scf.if %104 {
      %cst_101 = arith.constant 0.000000e+00 : f32
      %124 = vector.broadcast %cst_101 : f32 to vector<1x16x2xf32>
      %c0_102 = arith.constant 0 : index
      %c0_103 = arith.constant 0 : index
      %c0_104 = arith.constant 0 : index
      %125 = vector.load %arg4[%c0_102, %c0_103, %c0_104] : memref<1x16x2xf32, #tpu.memory_space<vmem>>, vector<1x16x2xf32>
      tpu.vector_store %arg4[%c0_102, %c0_103, %c0_104], %124 {strides = array<i32>} : memref<1x16x2xf32, #tpu.memory_space<vmem>>, vector<1x16x2xf32>,
    } else {
    }
    %cst_91 = arith.constant dense<0.000000e+00> : vector<4xf32>
    %105 = vector.multi_reduction <add>, %21, %cst_91 [1] : vector<4x64xf32> to vector<4xf32>
    %106 = vector.shape_cast %105 : vector<4xf32> to vector<4x1xf32>
    %cst_92 = arith.constant dense<0.000000e+00> : vector<12xf32>
    %107 = vector.multi_reduction <add>, %101, %cst_92 [1] : vector<12x64xf32> to vector<12xf32>
    %108 = vector.shape_cast %107 : vector<12xf32> to vector<12x1xf32>
    %109 = tpu.concatenate %106, %108 in 0 : vector<4x1xf32>, vector<12x1xf32> -> vector<16x1xf32>
    %110 = arith.mulf %21, %21 : vector<4x64xf32>
    %cst_93 = arith.constant dense<0.000000e+00> : vector<4xf32>
    %111 = vector.multi_reduction <add>, %110, %cst_93 [1] : vector<4x64xf32> to vector<4xf32>
    %112 = vector.shape_cast %111 : vector<4xf32> to vector<4x1xf32>
    %113 = arith.mulf %101, %101 : vector<12x64xf32>
    %cst_94 = arith.constant dense<0.000000e+00> : vector<12xf32>
    %114 = vector.multi_reduction <add>, %113, %cst_94 [1] : vector<12x64xf32> to vector<12xf32>
    %115 = vector.shape_cast %114 : vector<12xf32> to vector<12x1xf32>
    %116 = tpu.concatenate %112, %115 in 0 : vector<4x1xf32>, vector<12x1xf32> -> vector<16x1xf32>
    %c0_95 = arith.constant 0 : index
    %c0_96 = arith.constant 0 : index
    %c0_97 = arith.constant 0 : index
    %117 = vector.load %arg4[%c0_95, %c0_96, %c0_97] : memref<1x16x2xf32, #tpu.memory_space<vmem>>, vector<1x16x2xf32>
    %118 = vector.shape_cast %117 : vector<1x16x2xf32> to vector<16x2xf32>
    %119 = tpu.concatenate %109, %116 in 1 : vector<16x1xf32>, vector<16x1xf32> -> vector<16x2xf32>
    %120 = arith.addf %118, %119 : vector<16x2xf32>
    %c0_98 = arith.constant 0 : index
    %c0_99 = arith.constant 0 : index
    %c0_100 = arith.constant 0 : index
    %121 = vector.load %arg4[%c0_98, %c0_99, %c0_100] : memref<1x16x2xf32, #tpu.memory_space<vmem>>, vector<1x16x2xf32>
    %122 = vector.shape_cast %121 : vector<1x16x2xf32> to vector<16x2xf32>
    %123 = vector.shape_cast %120 : vector<16x2xf32> to vector<1x16x2xf32>
    tpu.vector_store %arg4[%c0_98, %c0_99, %c0_100], %123 {strides = array<i32>} : memref<1x16x2xf32, #tpu.memory_space<vmem>>, vector<1x16x2xf32>,
    return
  }
  func.func @transform_0(%arg0: i32, %arg1: i32) -> (i32, i32, i32, i32, i32) {
    %c0_i32 = arith.constant 0 : i32
    %c0_i32_0 = arith.constant 0 : i32
    %c0_i32_1 = arith.constant 0 : i32
    %c0_i32_2 = arith.constant 0 : i32
    %c0_i32_3 = arith.constant 0 : i32
    return %arg0, %c0_i32, %c0_i32_0, %c0_i32_1, %c0_i32_2 : i32, i32, i32, i32, i32
  }
  func.func @transform_1(%arg0: i32, %arg1: i32) -> (i32, i32, i32) {
    %c0_i32 = arith.constant 0 : i32
    %c0_i32_0 = arith.constant 0 : i32
    %c0_i32_1 = arith.constant 0 : i32
    %c0_i32_2 = arith.constant 0 : i32
    return %c0_i32, %c0_i32_0, %c0_i32_1 : i32, i32, i32
  }
  func.func @transform_2(%arg0: i32, %arg1: i32) -> (i32, i32, i32) {
    %c0_i32 = arith.constant 0 : i32
    %c0_i32_0 = arith.constant 0 : i32
    %c0_i32_1 = arith.constant 0 : i32
    return %arg0, %c0_i32, %c0_i32_0 : i32, i32, i32
  }
}

</mosaic_0001>

<llo_original>
// kernel: tpu_custom_call.1
$region0: #{tpu_custom_call.1}
  #allocation0 [shape = 'u32[]', space=smem, size = 0x4, offset = 0x4, fixed_abs, tag = 'smem constant byte address 0x4 - core index']
  #allocation1 [shape = 'u32[144,128]{1,0:T(1,128)}', space=vmem, size = 0x12000, scoped, tag = 'internal scratch']
  %s0 = inlined_call_operand.vmem [shape: f32[2,4,4,9,9], index: 0, kind: input, shape index: {}]
  %s1 = inlined_call_operand.vmem [shape: f32[9,12,4], index: 1, kind: input, shape index: {}]
  %s2 = inlined_call_operand.vmem [shape: f32[2,16,2], index: 2, kind: output, shape index: {}]
  %s3 = sld [smem:[#allocation0]]
  $region45: #{tpu_custom_call.1} parent=0
    _
  %s5 = ssub.s32 1, %s3
  %s6 = scalar_select 0, %s5, %s3
  loop: start=0, step=1, limit=4
  $region2: #{tpu_custom_call.1} parent=0 // loop_pre_header
    _
  $region3: #{tpu_custom_call.1} parent=0 // loop_header
    %s8 = sphi 0, %s12
    %p9 = scmp.ge.s32.totalorder %s8, 4
    %s15 = sphi 0, %s27
    %s16 = sphi 0, %s23
    %s17 = sphi 0, %s15
    %s18 = sphi 0, %s16
    %s19 = sphi 0, %s17
    %s20 = sphi 0, %s18
    %s30 = sphi 0, %s32
    %s33 = sphi 0, %s30
    %s34 = sphi 0, %s33
    %s50 = sphi 0, %s34
    %s54 = sphi 0, %s54
    %s56 = sphi 0, %s54
    %s57 = sphi 0, %s56
    %s71 = sphi 0, %s57
    %s77 = sphi 0, %s79
    %s80 = sphi 0, %s77
    %s81 = sphi 0, %s80
    %s97 = sphi 0, %s81
  $region4: #{tpu_custom_call.1} parent=0 // loop_header_branch
    %11 = sbr.rel (%p9) target = $region8
  $region5: #{tpu_custom_call.1} parent=0 // loop_body
    %s13 = ssub.s32 %s8, 1
    %s14 = ssub.s32 %s8, 2
    %s21 = sadd.s32 1, %s16
    %p22 = scmp.ge.s32.totalorder %s21, 1
    %s23 = scalar_select %p22, 0, %s21
    %s24 = sadd.s32 1, %s15
    %s25 = scalar_select %p22, %s24, %s15
    %p26 = scmp.ge.s32.totalorder %s25, 2
    %s27 = scalar_select %p26, 0, %s25
    %s28 = ssub.s32 %s15, %s27
    %p29 = scmp.eq.s32.totalorder %s28, 0
    %s31 = sadd.s32 %s30, 1
    %s32 = scalar_select %p29, %s30, %s31
    %p35 = pneg %p29
    %p36 = scmp.eq.s32.totalorder %s8, 1
    %p37 = por %p35, %p36
    %p38 = scmp.ne.s32.totalorder %s30, %s33
    %p39 = scmp.eq.s32.totalorder %s8, 0
    %p40 = por %p38, %p39
    %p41 = scmp.ne.s32.totalorder %s30, %s33
    %p42 = scmp.eq.s32.totalorder %s13, 1
    %p43 = por %p41, %p42
    %p44 = scmp.ne.s32.totalorder %s33, %s34
    %p45 = scmp.eq.s32.totalorder %s13, 0
    %p46 = por %p44, %p45
    %p47 = scmp.ne.s32.totalorder %s33, %s34
    %p48 = scmp.eq.s32.totalorder %s14, 1
    %p49 = por %p47, %p48
    %p51 = scmp.ne.s32.totalorder %s34, %s50
    %p52 = scmp.eq.s32.totalorder %s14, 0
    %p53 = por %p51, %p52
    %s55 = sadd.s32 %s54, 1
    %p58 = scmp.eq.s32.totalorder %s8, 1
    %p59 = scmp.ne.s32.totalorder %s54, %s56
    %p60 = scmp.eq.s32.totalorder %s8, 0
    %p61 = por %p59, %p60
    %p62 = scmp.ne.s32.totalorder %s54, %s56
    %p63 = scmp.eq.s32.totalorder %s13, 1
    %p64 = por %p62, %p63
    %p65 = scmp.ne.s32.totalorder %s56, %s57
    %p66 = scmp.eq.s32.totalorder %s13, 0
    %p67 = por %p65, %p66
    %p68 = scmp.ne.s32.totalorder %s56, %s57
    %p69 = scmp.eq.s32.totalorder %s14, 1
    %p70 = por %p68, %p69
    %p72 = scmp.ne.s32.totalorder %s57, %s71
    %p73 = scmp.eq.s32.totalorder %s14, 0
    %p74 = por %p72, %p73
    %s75 = ssub.s32 %s15, %s27
    %p76 = scmp.eq.s32.totalorder %s75, 0
    %s78 = sadd.s32 %s77, 1
    %s79 = scalar_select %p76, %s77, %s78
    %p82 = pneg %p76
    %p83 = scmp.eq.s32.totalorder %s8, 1
    %p84 = por %p82, %p83
    %p85 = scmp.ne.s32.totalorder %s77, %s80
    %p86 = scmp.eq.s32.totalorder %s8, 0
    %p87 = por %p85, %p86
    %p88 = scmp.ne.s32.totalorder %s77, %s80
    %p89 = scmp.eq.s32.totalorder %s13, 1
    %p90 = por %p88, %p89
    %p91 = scmp.ne.s32.totalorder %s80, %s81
    %p92 = scmp.eq.s32.totalorder %s13, 0
    %p93 = por %p91, %p92
    %p94 = scmp.ne.s32.totalorder %s80, %s81
    %p95 = scmp.eq.s32.totalorder %s14, 1
    %p96 = por %p94, %p95
    %p98 = scmp.ne.s32.totalorder %s81, %s97
    %p99 = scmp.eq.s32.totalorder %s14, 0
    %p100 = por %p98, %p99
    %p101 = scmp.le.s32.totalorder 1, %s8
    %p102 = scmp.lt.s32.totalorder %s8, 3
    %p103 = pnand %p101, %p102
    %p104 = pneg %p103
    // Predicated region
    $region9: #{tpu_custom_call.1} parent=5 // pred_check
      _
    $region10: #{tpu_custom_call.1} parent=5 // pred_check_branch
      %106 = sbr.rel (%p103) target = $region12
    $region11: #{tpu_custom_call.1} parent=5 // pred_region
      %s107 = ssub.s32 %s8, 1
      // Predicated region
      $region13: #{tpu_custom_call.1} parent=11 // pred_check
        %p108 = pneg %p67
      $region14: #{tpu_custom_call.1} parent=11 // pred_check_branch
        %110 = sbr.rel (%p108) target = $region16
      $region15: #{tpu_custom_call.1} parent=11 // pred_region
        _
      $region16: #{tpu_custom_call.1} parent=11 // pred_fallthru
        _
    $region12: #{tpu_custom_call.1} parent=5 // pred_fallthru
      _
    %p111 = scmp.lt.s32.totalorder %s8, 2
    // Predicated region
    $region17: #{tpu_custom_call.1} parent=5 // pred_check
      %p112 = pneg %p111
    $region18: #{tpu_custom_call.1} parent=5 // pred_check_branch
      %114 = sbr.rel (%p112) target = $region20
    $region19: #{tpu_custom_call.1} parent=5 // pred_region
      // Predicated region
      $region21: #{tpu_custom_call.1} parent=19 // pred_check
        %p115 = pneg %p40
      $region22: #{tpu_custom_call.1} parent=19 // pred_check_branch
        %117 = sbr.rel (%p115) target = $region24
      $region23: #{tpu_custom_call.1} parent=19 // pred_region
        %p118 = scmp.lt.s32.totalorder %s15, 1
        %s119 = scalar_select %p118, %s15, 1
        %s120 = smul.addr %s119, 32
        %s121 = smul.addr %s120, 8
        %s122 = scalar_lea.vmem %s0, %s121
      $region24: #{tpu_custom_call.1} parent=19 // pred_fallthru
        _
    $region20: #{tpu_custom_call.1} parent=5 // pred_fallthru
      _
    %p123 = scmp.le.s32.totalorder 1, %s8
    %p124 = scmp.lt.s32.totalorder %s8, 3
    %p125 = pnand %p123, %p124
    %p126 = pneg %p125
    // Predicated region
    $region25: #{tpu_custom_call.1} parent=5 // pred_check
      _
    $region26: #{tpu_custom_call.1} parent=5 // pred_check_branch
      %128 = sbr.rel (%p125) target = $region28
    $region27: #{tpu_custom_call.1} parent=5 // pred_region
      %s129 = ssub.s32 %s8, 1
      %p130 = scmp.lt.s32.totalorder %s17, 1
      %s131 = scalar_select %p130, %s17, 1
      %s132 = smul.addr %s131, 32
      %s133 = smul.addr %s132, 8
      %s134 = scalar_lea.vmem %s0, %s133
      %p135 = pneg %p46
      %p136 = pneg %p43
      %p137 = pneg %p67
      %p138 = pneg %p64
      %p139 = pneg %p93
      %p140 = pneg %p90
      %p141 = scmp.lt.s32.totalorder %s17, 1
      %s142 = scalar_select %p141, %s17, 1
      %s143 = smul.addr %s142, 2
      %s144 = smul.addr %s143, 8
      %s145 = scalar_lea.vmem %s2, %s144
      %p146 = scmp.lt.s32.totalorder %s17, 1
      %s147 = scalar_select %p146, %s17, 1
      %s148 = smul.addr %s147, 32
      %s149 = smul.addr %s148, 8
      %s150 = scalar_lea.vmem %s0, %s149
      %p151 = scmp.lt.s32.totalorder %s17, 1
      %s152 = scalar_select %p151, %s17, 1
      %s153 = smul.addr %s152, 2
      %s154 = smul.addr %s153, 8
      %s155 = scalar_lea.vmem %s2, %s154
      %s156 = smul.u32 %s18, 8
      %s157 = sadd.s32 %s156, 192
      %s158 = scalar_lea.vmem %s150, %s157
      %v159 = vld [vmem:[%s158] sm:$0xff]
      %v160 = vld [vmem:[%s158 + $0x10] sm:$0xff]
      %v161 = vld [vmem:[%s158 + $0x20] sm:$0xff]
      %v162 = vld [vmem:[%s158 + $0x30] sm:$0xff]
      %s163 = sadd.s32 %s156, 128
      %s164 = scalar_lea.vmem %s150, %s163
      %v165 = vld [vmem:[%s164] sm:$0xff]
      %v166 = vld [vmem:[%s164 + $0x10] sm:$0xff]
      %v167 = vld [vmem:[%s164 + $0x20] sm:$0xff]
      %v168 = vld [vmem:[%s164 + $0x30] sm:$0xff]
      %173 = vrot.lane.b32.xlu0 %v165, 127
      %v174 = vpop.permute.xlu0 %173
      %175 = vrot.lane.b32.xlu0 %v166, 127
      %v176 = vpop.permute.xlu0 %175
      %177 = vrot.lane.b32.xlu0 %v167, 127
      %v178 = vpop.permute.xlu0 %177
      %179 = vrot.lane.b32.xlu0 %v168, 127
      %v180 = vpop.permute.xlu0 %179
      %v185 = vmax.f32 %v159, %v174
      %v186 = vmax.f32 %v160, %v176
      %v187 = vmax.f32 %v161, %v178
      %v188 = vmax.f32 %v162, %v180
      %s189 = sadd.s32 %s156, 1
      %s190 = sadd.s32 %s189, 64
      %s191 = scalar_lea.vmem %s150, %s190
      %v192 = vld [vmem:[%s191] sm:$0xff]
      %v193 = vld [vmem:[%s191 + $0x10] sm:$0xff]
      %v194 = vld [vmem:[%s191 + $0x20] sm:$0xff]
      %v195 = vld [vmem:[%s191 + $0x30] sm:$0xff]
      %s196 = scalar_lea.vmem %s150, %s189
      %v197 = vld [vmem:[%s196] sm:$0xff]
      %v198 = vld [vmem:[%s196 + $0x10] sm:$0xff]
      %v199 = vld [vmem:[%s196 + $0x20] sm:$0xff]
      %v200 = vld [vmem:[%s196 + $0x30] sm:$0xff]
      %205 = vrot.lane.b32.xlu0 %v197, 127
      %v206 = vpop.permute.xlu0 %205
      %207 = vrot.lane.b32.xlu0 %v198, 127
      %v208 = vpop.permute.xlu0 %207
      %209 = vrot.lane.b32.xlu0 %v199, 127
      %v210 = vpop.permute.xlu0 %209
      %211 = vrot.lane.b32.xlu0 %v200, 127
      %v212 = vpop.permute.xlu0 %211
      %v217 = vmax.f32 %v192, %v206
      %v218 = vmax.f32 %v193, %v208
      %v219 = vmax.f32 %v194, %v210
      %v220 = vmax.f32 %v195, %v212
      %v221 = vmax.f32 %v185, %v217
      %v222 = vmax.f32 %v186, %v218
      %v223 = vmax.f32 %v187, %v219
      %v224 = vmax.f32 %v188, %v220
      %v225 = vcombine.low %v221, %v223
      %v226 = vcombine.high %v221, %v223
      %v228 = vunpack.c.l.s4 1983009808
      %v229 = vunpack.c.0.s8 %v228
      %v230 = vlaneseq
      %v231 = vshrl.u32 %v230, 7
      %v232 = vsub.s32 %v229, %v231
      %v233 = vrot.slane %v225, %v232
      %v235 = vunpack.c.l.s4 1983009808
      %v236 = vunpack.c.0.s8 %v235
      %v237 = vlaneseq
      %v238 = vshrl.u32 %v237, 7
      %v239 = vsub.s32 %v236, %v238
      %v240 = vrot.slane %v226, %v239
      %v241 = vcombine.low %v222, %v224
      %v242 = vcombine.high %v222, %v224
      %v244 = vunpack.c.l.s4 1983009808
      %v245 = vunpack.c.0.s8 %v244
      %v246 = vlaneseq
      %v247 = vshrl.u32 %v246, 7
      %v248 = vsub.s32 %v245, %v247
      %v249 = vrot.slane %v241, %v248
      %v251 = vunpack.c.l.s4 1983009808
      %v252 = vunpack.c.0.s8 %v251
      %v253 = vlaneseq
      %v254 = vshrl.u32 %v253, 7
      %v255 = vsub.s32 %v252, %v254
      %v256 = vrot.slane %v242, %v255
      %v257 = vcombine.low %v233, %v249
      %v258 = vcombine.high %v233, %v249
      %v260 = vunpack.c.l.s4 1934713408
      %v261 = vunpack.c.0.s8 %v260
      %v262 = vlaneseq
      %v263 = vshrl.u32 %v262, 7
      %v264 = vsub.s32 %v261, %v263
      %v265 = vrot.slane %v257, %v264
      %v267 = vunpack.c.l.s4 1934713408
      %v268 = vunpack.c.0.s8 %v267
      %v269 = vlaneseq
      %v270 = vshrl.u32 %v269, 7
      %v271 = vsub.s32 %v268, %v270
      %v272 = vrot.slane %v258, %v271
      %v273 = vcombine.low %v240, %v256
      %v274 = vcombine.high %v240, %v256
      %v276 = vunpack.c.l.s4 1934713408
      %v277 = vunpack.c.0.s8 %v276
      %v278 = vlaneseq
      %v279 = vshrl.u32 %v278, 7
      %v280 = vsub.s32 %v277, %v279
      %v281 = vrot.slane %v273, %v280
      %v283 = vunpack.c.l.s4 1934713408
      %v284 = vunpack.c.0.s8 %v283
      %v285 = vlaneseq
      %v286 = vshrl.u32 %v285, 7
      %v287 = vsub.s32 %v284, %v286
      %v288 = vrot.slane %v274, %v287
      %v289 = vcombine.high %v265, 0.0
      %v290 = vcombine.high %v272, 0.0
      %v291 = vcombine.high %v281, 0.0
      %v292 = vcombine.high %v288, 0.0
      %294 = vrot.lane.b32.xlu0 %v289, 8
      %v295 = vpop.permute.xlu0 %294
      %298 = vrot.lane.b32.xlu0 %v272, 16
      %v299 = vpop.permute.xlu0 %298
      %302 = vrot.lane.b32.xlu0 %v290, 24
      %v303 = vpop.permute.xlu0 %302
      %306 = vrot.lane.b32.xlu0 %v281, 32
      %v307 = vpop.permute.xlu0 %306
      %310 = vrot.lane.b32.xlu0 %v291, 40
      %v311 = vpop.permute.xlu0 %310
      %314 = vrot.lane.b32.xlu0 %v288, 48
      %v315 = vpop.permute.xlu0 %314
      %318 = vrot.lane.b32.xlu0 %v292, 56
      %v319 = vpop.permute.xlu0 %318
      %vm321 = vcmask 64512
      %v322 = vsel %vm321, %v265, %v295
      %vm323 = vcmask 130048
      %v324 = vsel %vm323, %v322, %v299
      %vm325 = vcmask 195584
      %v326 = vsel %vm325, %v324, %v303
      %vm327 = vcmask 261120
      %v328 = vsel %vm327, %v326, %v307
      %vm329 = vcmask 326656
      %v330 = vsel %vm329, %v328, %v311
      %vm331 = vcmask 392192
      %v332 = vsel %vm331, %v330, %v315
      %vm333 = vcmask 457728
      %v334 = vsel %vm333, %v332, %v319
      %s335 = scalar_lea.vmem %s150, %s156
      %v336 = vld [vmem:[%s335] sm:$0xff]
      %v337 = vld [vmem:[%s335 + $0x10] sm:$0xff]
      %v338 = vld [vmem:[%s335 + $0x20] sm:$0xff]
      %v339 = vld [vmem:[%s335 + $0x30] sm:$0xff]
      %v340 = vcombine.low %v336, %v338
      %v341 = vcombine.high %v336, %v338
      %v343 = vunpack.c.l.s4 1983009808
      %v344 = vunpack.c.0.s8 %v343
      %v345 = vlaneseq
      %v346 = vshrl.u32 %v345, 7
      %v347 = vsub.s32 %v344, %v346
      %v348 = vrot.slane %v340, %v347
      %v350 = vunpack.c.l.s4 1983009808
      %v351 = vunpack.c.0.s8 %v350
      %v352 = vlaneseq
      %v353 = vshrl.u32 %v352, 7
      %v354 = vsub.s32 %v351, %v353
      %v355 = vrot.slane %v341, %v354
      %v356 = vcombine.low %v337, %v339
      %v357 = vcombine.high %v337, %v339
      %v359 = vunpack.c.l.s4 1983009808
      %v360 = vunpack.c.0.s8 %v359
      %v361 = vlaneseq
      %v362 = vshrl.u32 %v361, 7
      %v363 = vsub.s32 %v360, %v362
      %v364 = vrot.slane %v356, %v363
      %v366 = vunpack.c.l.s4 1983009808
      %v367 = vunpack.c.0.s8 %v366
      %v368 = vlaneseq
      %v369 = vshrl.u32 %v368, 7
      %v370 = vsub.s32 %v367, %v369
      %v371 = vrot.slane %v357, %v370
      %v372 = vcombine.low %v348, %v364
      %v373 = vcombine.high %v348, %v364
      %v375 = vunpack.c.l.s4 1934713408
      %v376 = vunpack.c.0.s8 %v375
      %v377 = vlaneseq
      %v378 = vshrl.u32 %v377, 7
      %v379 = vsub.s32 %v376, %v378
      %v380 = vrot.slane %v372, %v379
      %v382 = vunpack.c.l.s4 1934713408
      %v383 = vunpack.c.0.s8 %v382
      %v384 = vlaneseq
      %v385 = vshrl.u32 %v384, 7
      %v386 = vsub.s32 %v383, %v385
      %v387 = vrot.slane %v373, %v386
      %v388 = vcombine.low %v355, %v371
      %v389 = vcombine.high %v355, %v371
      %v391 = vunpack.c.l.s4 1934713408
      %v392 = vunpack.c.0.s8 %v391
      %v393 = vlaneseq
      %v394 = vshrl.u32 %v393, 7
      %v395 = vsub.s32 %v392, %v394
      %v396 = vrot.slane %v388, %v395
      %v398 = vunpack.c.l.s4 1934713408
      %v399 = vunpack.c.0.s8 %v398
      %v400 = vlaneseq
      %v401 = vshrl.u32 %v400, 7
      %v402 = vsub.s32 %v399, %v401
      %v403 = vrot.slane %v389, %v402
      %v404 = vcombine.high %v380, 0.0
      %v405 = vcombine.high %v387, 0.0
      %v406 = vcombine.high %v396, 0.0
      %v407 = vcombine.high %v403, 0.0
      %409 = vrot.lane.b32.xlu0 %v404, 8
      %v410 = vpop.permute.xlu0 %409
      %413 = vrot.lane.b32.xlu0 %v387, 16
      %v414 = vpop.permute.xlu0 %413
      %417 = vrot.lane.b32.xlu0 %v405, 24
      %v418 = vpop.permute.xlu0 %417
      %421 = vrot.lane.b32.xlu0 %v396, 32
      %v422 = vpop.permute.xlu0 %421
      %425 = vrot.lane.b32.xlu0 %v406, 40
      %v426 = vpop.permute.xlu0 %425
      %429 = vrot.lane.b32.xlu0 %v403, 48
      %v430 = vpop.permute.xlu0 %429
      %433 = vrot.lane.b32.xlu0 %v407, 56
      %v434 = vpop.permute.xlu0 %433
      %v436 = vsel %vm321, %v380, %v410
      %v437 = vsel %vm323, %v436, %v414
      %v438 = vsel %vm325, %v437, %v418
      %v439 = vsel %vm327, %v438, %v422
      %v440 = vsel %vm329, %v439, %v426
      %v441 = vsel %vm331, %v440, %v430
      %v442 = vsel %vm333, %v441, %v434
      %v443 = vld [vmem:[%s1] sm:$0xff]
      %v444 = vld [vmem:[%s1 + $0x8] sm:$0xf]
      %s445 = sadd.s32 %s156, 64
      %s446 = scalar_lea.vmem %s150, %s445
      %v447 = vld [vmem:[%s446] sm:$0xff]
      %v448 = vld [vmem:[%s446 + $0x10] sm:$0xff]
      %v449 = vld [vmem:[%s446 + $0x20] sm:$0xff]
      %v450 = vld [vmem:[%s446 + $0x30] sm:$0xff]
      %v451 = vcombine.low %v447, %v449
      %v452 = vcombine.high %v447, %v449
      %v454 = vunpack.c.l.s4 1983009808
      %v455 = vunpack.c.0.s8 %v454
      %v456 = vlaneseq
      %v457 = vshrl.u32 %v456, 7
      %v458 = vsub.s32 %v455, %v457
      %v459 = vrot.slane %v451, %v458
      %v461 = vunpack.c.l.s4 1983009808
      %v462 = vunpack.c.0.s8 %v461
      %v463 = vlaneseq
      %v464 = vshrl.u32 %v463, 7
      %v465 = vsub.s32 %v462, %v464
      %v466 = vrot.slane %v452, %v465
      %v467 = vcombine.low %v448, %v450
      %v468 = vcombine.high %v448, %v450
      %v470 = vunpack.c.l.s4 1983009808
      %v471 = vunpack.c.0.s8 %v470
      %v472 = vlaneseq
      %v473 = vshrl.u32 %v472, 7
      %v474 = vsub.s32 %v471, %v473
      %v475 = vrot.slane %v467, %v474
      %v477 = vunpack.c.l.s4 1983009808
      %v478 = vunpack.c.0.s8 %v477
      %v479 = vlaneseq
      %v480 = vshrl.u32 %v479, 7
      %v481 = vsub.s32 %v478, %v480
      %v482 = vrot.slane %v468, %v481
      %v483 = vcombine.low %v459, %v475
      %v484 = vcombine.high %v459, %v475
      %v486 = vunpack.c.l.s4 1934713408
      %v487 = vunpack.c.0.s8 %v486
      %v488 = vlaneseq
      %v489 = vshrl.u32 %v488, 7
      %v490 = vsub.s32 %v487, %v489
      %v491 = vrot.slane %v483, %v490
      %v493 = vunpack.c.l.s4 1934713408
      %v494 = vunpack.c.0.s8 %v493
      %v495 = vlaneseq
      %v496 = vshrl.u32 %v495, 7
      %v497 = vsub.s32 %v494, %v496
      %v498 = vrot.slane %v484, %v497
      %v499 = vcombine.low %v466, %v482
      %v500 = vcombine.high %v466, %v482
      %v502 = vunpack.c.l.s4 1934713408
      %v503 = vunpack.c.0.s8 %v502
      %v504 = vlaneseq
      %v505 = vshrl.u32 %v504, 7
      %v506 = vsub.s32 %v503, %v505
      %v507 = vrot.slane %v499, %v506
      %v509 = vunpack.c.l.s4 1934713408
      %v510 = vunpack.c.0.s8 %v509
      %v511 = vlaneseq
      %v512 = vshrl.u32 %v511, 7
      %v513 = vsub.s32 %v510, %v512
      %v514 = vrot.slane %v500, %v513
      %v515 = vcombine.high %v491, 0.0
      %v516 = vcombine.high %v498, 0.0
      %v517 = vcombine.high %v507, 0.0
      %v518 = vcombine.high %v514, 0.0
      %520 = vrot.lane.b32.xlu0 %v515, 8
      %v521 = vpop.permute.xlu0 %520
      %524 = vrot.lane.b32.xlu0 %v498, 16
      %v525 = vpop.permute.xlu0 %524
      %528 = vrot.lane.b32.xlu0 %v516, 24
      %v529 = vpop.permute.xlu0 %528
      %532 = vrot.lane.b32.xlu0 %v507, 32
      %v533 = vpop.permute.xlu0 %532
      %536 = vrot.lane.b32.xlu0 %v517, 40
      %v537 = vpop.permute.xlu0 %536
      %540 = vrot.lane.b32.xlu0 %v514, 48
      %v541 = vpop.permute.xlu0 %540
      %544 = vrot.lane.b32.xlu0 %v518, 56
      %v545 = vpop.permute.xlu0 %544
      %v547 = vsel %vm321, %v491, %v521
      %v548 = vsel %vm323, %v547, %v525
      %v549 = vsel %vm325, %v548, %v529
      %v550 = vsel %vm327, %v549, %v533
      %v551 = vsel %vm329, %v550, %v537
      %v552 = vsel %vm331, %v551, %v541
      %v553 = vsel %vm333, %v552, %v545
      %s554 = scalar_lea.vmem %s1, 16
      %v555 = vld [vmem:[%s554] sm:$0xff]
      %v556 = vld [vmem:[%s554 + $0x8] sm:$0xf]
      %vm557 = vcmask 31744
      %v559 = vsel %vm557, %v555, 0
      %v562 = vsel %vm557, %v556, 0
      %vm564 = vcmask 1043456
      %v566 = vsel %vm564, %v553, 0
      %568 = vmatprep.subr.mxu0 0.0
      %569 = vmatpush1.msra.mxu0 0.0
      %570 = vmatprep.subr.mxu0 0.0
      %571 = vmatpush1.msra.mxu0 0.0
      %572 = vmatprep.subr.mxu0 0.0
      %573 = vmatpush1.msra.mxu0 0.0
      %574 = vmatprep.subr.mxu0 0.0
      %575 = vmatpush1.msra.mxu0 0.0
      %576 = vmatprep.subr.mxu0 0.0
      %577 = vmatpush1.msra.mxu0 0.0
      %578 = vmatprep.subr.mxu0 0.0
      %579 = vmatpush1.msra.mxu0 0.0
      %580 = vmatprep.subr.mxu0 0.0
      %581 = vmatpush1.msra.mxu0 0.0
      %582 = vmatprep.subr.mxu0 0.0
      %583 = vmatpush1.msra.mxu0 0.0
      %584 = vmatprep.subr.mxu0 0.0
      %585 = vmatpush1.msra.mxu0 0.0
      %586 = vmatprep.subr.mxu0 0.0
      %587 = vmatpush1.msra.mxu0 0.0
      %588 = vmatprep.subr.mxu0 0.0
      %589 = vmatpush1.msra.mxu0 0.0
      %590 = vmatprep.subr.mxu0 0.0
      %591 = vmatpush1.msra.mxu0 0.0
      %592 = vmatprep.subr.mxu0 0.0
      %593 = vmatpush1.msra.mxu0 0.0
      %594 = vmatprep.subr.mxu0 0.0
      %595 = vmatpush1.msra.mxu0 0.0
      %596 = vmatprep.subr.mxu0 0.0
      %597 = vmatpush1.msra.mxu0 0.0
      %598 = vmatprep.subr.mxu0 0.0
      %599 = vmatpush1.msra.mxu0 %v566
      %600 = vmatprep.subr.mxu0 0.0
      %601 = vmatpush2.msra.mxu0 0.0
      %602 = vmatprep.subr.mxu0 0.0
      %603 = vmatpush2.msra.mxu0 0.0
      %604 = vmatprep.subr.mxu0 0.0
      %605 = vmatpush2.msra.mxu0 0.0
      %606 = vmatprep.subr.mxu0 0.0
      %607 = vmatpush2.msra.mxu0 0.0
      %608 = vmatprep.subr.mxu0 0.0
      %609 = vmatpush2.msra.mxu0 0.0
      %610 = vmatprep.subr.mxu0 0.0
      %611 = vmatpush2.msra.mxu0 0.0
      %612 = vmatprep.subr.mxu0 0.0
      %613 = vmatpush2.msra.mxu0 0.0
      %614 = vmatprep.subr.mxu0 0.0
      %615 = vmatpush2.msra.mxu0 0.0
      %616 = vmatprep.subr.mxu0 0.0
      %617 = vmatpush2.msra.mxu0 0.0
      %618 = vmatprep.subr.mxu0 0.0
      %619 = vmatpush2.msra.mxu0 0.0
      %620 = vmatprep.subr.mxu0 0.0
      %621 = vmatpush2.msra.mxu0 0.0
      %622 = vmatprep.subr.mxu0 0.0
      %623 = vmatpush2.msra.mxu0 0.0
      %624 = vmatprep.subr.mxu0 0.0
      %625 = vmatpush2.msra.mxu0 0.0
      %626 = vmatprep.subr.mxu0 0.0
      %627 = vmatpush2.msra.mxu0 0.0
      %628 = vmatprep.subr.mxu0 0.0
      %629 = vmatpush2.msra.mxu0 0.0
      %630 = vmatprep.subr.mxu0 0.0
      %631 = vmatpush2.msra.mxu0 0.0
      %632 = vmatprep.mubr.f32.mxu0 0.0
      %633 = vmatmul.mubr.f32.gmra.mxu0 %v559
      %v634 = vpop.f32.mrf.mxu0
      %v635 = vadd.f32 0.0, %v634
      %v636 = vpop.f32.mrf.mxu0
      %637 = vmatprep.mubr.f32.mxu0 0.0
      %638 = vmatmul.mubr.f32.gmra.mxu0 %v562
      %v639 = vpop.f32.mrf.mxu0
      %v640 = vadd.f32 0.0, %v639
      %v641 = vpop.f32.mrf.mxu0
      %642 = vdwg.mxu0
      %v644 = vsel %vm557, %v443, 0
      %v647 = vsel %vm557, %v444, 0
      %v650 = vsel %vm564, %v442, 0
      %652 = vmatprep.subr.mxu0 0.0
      %653 = vmatpush1.msra.mxu0 0.0
      %654 = vmatprep.subr.mxu0 0.0
      %655 = vmatpush1.msra.mxu0 0.0
      %656 = vmatprep.subr.mxu0 0.0
      %657 = vmatpush1.msra.mxu0 0.0
      %658 = vmatprep.subr.mxu0 0.0
      %659 = vmatpush1.msra.mxu0 0.0
      %660 = vmatprep.subr.mxu0 0.0
      %661 = vmatpush1.msra.mxu0 0.0
      %662 = vmatprep.subr.mxu0 0.0
      %663 = vmatpush1.msra.mxu0 0.0
      %664 = vmatprep.subr.mxu0 0.0
      %665 = vmatpush1.msra.mxu0 0.0
      %666 = vmatprep.subr.mxu0 0.0
      %667 = vmatpush1.msra.mxu0 0.0
      %668 = vmatprep.subr.mxu0 0.0
      %669 = vmatpush1.msra.mxu0 0.0
      %670 = vmatprep.subr.mxu0 0.0
      %671 = vmatpush1.msra.mxu0 0.0
      %672 = vmatprep.subr.mxu0 0.0
      %673 = vmatpush1.msra.mxu0 0.0
      %674 = vmatprep.subr.mxu0 0.0
      %675 = vmatpush1.msra.mxu0 0.0
      %676 = vmatprep.subr.mxu0 0.0
      %677 = vmatpush1.msra.mxu0 0.0
      %678 = vmatprep.subr.mxu0 0.0
      %679 = vmatpush1.msra.mxu0 0.0
      %680 = vmatprep.subr.mxu0 0.0
      %681 = vmatpush1.msra.mxu0 0.0
      %682 = vmatprep.subr.mxu0 0.0
      %683 = vmatpush1.msra.mxu0 %v650
      %684 = vmatprep.subr.mxu0 0.0
      %685 = vmatpush2.msra.mxu0 0.0
      %686 = vmatprep.subr.mxu0 0.0
      %687 = vmatpush2.msra.mxu0 0.0
      %688 = vmatprep.subr.mxu0 0.0
      %689 = vmatpush2.msra.mxu0 0.0
      %690 = vmatprep.subr.mxu0 0.0
      %691 = vmatpush2.msra.mxu0 0.0
      %692 = vmatprep.subr.mxu0 0.0
      %693 = vmatpush2.msra.mxu0 0.0
      %694 = vmatprep.subr.mxu0 0.0
      %695 = vmatpush2.msra.mxu0 0.0
      %696 = vmatprep.subr.mxu0 0.0
      %697 = vmatpush2.msra.mxu0 0.0
      %698 = vmatprep.subr.mxu0 0.0
      %699 = vmatpush2.msra.mxu0 0.0
      %700 = vmatprep.subr.mxu0 0.0
      %701 = vmatpush2.msra.mxu0 0.0
      %702 = vmatprep.subr.mxu0 0.0
      %703 = vmatpush2.msra.mxu0 0.0
      %704 = vmatprep.subr.mxu0 0.0
      %705 = vmatpush2.msra.mxu0 0.0
      %706 = vmatprep.subr.mxu0 0.0
      %707 = vmatpush2.msra.mxu0 0.0
      %708 = vmatprep.subr.mxu0 0.0
      %709 = vmatpush2.msra.mxu0 0.0
      %710 = vmatprep.subr.mxu0 0.0
      %711 = vmatpush2.msra.mxu0 0.0
      %712 = vmatprep.subr.mxu0 0.0
      %713 = vmatpush2.msra.mxu0 0.0
      %714 = vmatprep.subr.mxu0 0.0
      %715 = vmatpush2.msra.mxu0 0.0
      %716 = vmatprep.mubr.f32.mxu0 0.0
      %717 = vmatmul.mubr.f32.gmra.mxu0 %v644
      %v718 = vpop.f32.mrf.mxu0
      %v719 = vadd.f32 %v635, %v718
      %v720 = vpop.f32.mrf.mxu0
      %721 = vmatprep.mubr.f32.mxu0 0.0
      %722 = vmatmul.mubr.f32.gmra.mxu0 %v647
      %v723 = vpop.f32.mrf.mxu0
      %v724 = vadd.f32 %v640, %v723
      %v725 = vpop.f32.mrf.mxu0
      %726 = vdwg.mxu0
      %v727 = vld [vmem:[%s335] sm:$0xff]
      %v728 = vld [vmem:[%s335 + $0x10] sm:$0xff]
      %v729 = vld [vmem:[%s335 + $0x20] sm:$0xff]
      %v730 = vld [vmem:[%s335 + $0x30] sm:$0xff]
      %735 = vrot.lane.b32.xlu0 %v727, 127
      %v736 = vpop.permute.xlu0 %735
      %737 = vrot.lane.b32.xlu0 %v728, 127
      %v738 = vpop.permute.xlu0 %737
      %739 = vrot.lane.b32.xlu0 %v729, 127
      %v740 = vpop.permute.xlu0 %739
      %741 = vrot.lane.b32.xlu0 %v730, 127
      %v742 = vpop.permute.xlu0 %741
      %v747 = vcombine.low %v736, %v740
      %v748 = vcombine.high %v736, %v740
      %v750 = vunpack.c.l.s4 1983009808
      %v751 = vunpack.c.0.s8 %v750
      %v752 = vlaneseq
      %v753 = vshrl.u32 %v752, 7
      %v754 = vsub.s32 %v751, %v753
      %v755 = vrot.slane %v747, %v754
      %v757 = vunpack.c.l.s4 1983009808
      %v758 = vunpack.c.0.s8 %v757
      %v759 = vlaneseq
      %v760 = vshrl.u32 %v759, 7
      %v761 = vsub.s32 %v758, %v760
      %v762 = vrot.slane %v748, %v761
      %v763 = vcombine.low %v738, %v742
      %v764 = vcombine.high %v738, %v742
      %v766 = vunpack.c.l.s4 1983009808
      %v767 = vunpack.c.0.s8 %v766
      %v768 = vlaneseq
      %v769 = vshrl.u32 %v768, 7
      %v770 = vsub.s32 %v767, %v769
      %v771 = vrot.slane %v763, %v770
      %v773 = vunpack.c.l.s4 1983009808
      %v774 = vunpack.c.0.s8 %v773
      %v775 = vlaneseq
      %v776 = vshrl.u32 %v775, 7
      %v777 = vsub.s32 %v774, %v776
      %v778 = vrot.slane %v764, %v777
      %v779 = vcombine.low %v755, %v771
      %v780 = vcombine.high %v755, %v771
      %v782 = vunpack.c.l.s4 1934713408
      %v783 = vunpack.c.0.s8 %v782
      %v784 = vlaneseq
      %v785 = vshrl.u32 %v784, 7
      %v786 = vsub.s32 %v783, %v785
      %v787 = vrot.slane %v779, %v786
      %v789 = vunpack.c.l.s4 1934713408
      %v790 = vunpack.c.0.s8 %v789
      %v791 = vlaneseq
      %v792 = vshrl.u32 %v791, 7
      %v793 = vsub.s32 %v790, %v792
      %v794 = vrot.slane %v780, %v793
      %v795 = vcombine.low %v762, %v778
      %v796 = vcombine.high %v762, %v778
      %v798 = vunpack.c.l.s4 1934713408
      %v799 = vunpack.c.0.s8 %v798
      %v800 = vlaneseq
      %v801 = vshrl.u32 %v800, 7
      %v802 = vsub.s32 %v799, %v801
      %v803 = vrot.slane %v795, %v802
      %v805 = vunpack.c.l.s4 1934713408
      %v806 = vunpack.c.0.s8 %v805
      %v807 = vlaneseq
      %v808 = vshrl.u32 %v807, 7
      %v809 = vsub.s32 %v806, %v808
      %v810 = vrot.slane %v796, %v809
      %v811 = vcombine.high %v787, 0.0
      %v812 = vcombine.high %v794, 0.0
      %v813 = vcombine.high %v803, 0.0
      %v814 = vcombine.high %v810, 0.0
      %816 = vrot.lane.b32.xlu0 %v811, 8
      %v817 = vpop.permute.xlu0 %816
      %820 = vrot.lane.b32.xlu0 %v794, 16
      %v821 = vpop.permute.xlu0 %820
      %824 = vrot.lane.b32.xlu0 %v812, 24
      %v825 = vpop.permute.xlu0 %824
      %828 = vrot.lane.b32.xlu0 %v803, 32
      %v829 = vpop.permute.xlu0 %828
      %832 = vrot.lane.b32.xlu0 %v813, 40
      %v833 = vpop.permute.xlu0 %832
      %836 = vrot.lane.b32.xlu0 %v810, 48
      %v837 = vpop.permute.xlu0 %836
      %840 = vrot.lane.b32.xlu0 %v814, 56
      %v841 = vpop.permute.xlu0 %840
      %v843 = vsel %vm321, %v787, %v817
      %v844 = vsel %vm323, %v843, %v821
      %v845 = vsel %vm325, %v844, %v825
      %v846 = vsel %vm327, %v845, %v829
      %v847 = vsel %vm329, %v846, %v833
      %v848 = vsel %vm331, %v847, %v837
      %v849 = vsel %vm333, %v848, %v841
      %s850 = scalar_lea.vmem %s1, 32
      %v851 = vld [vmem:[%s850] sm:$0xff]
      %v852 = vld [vmem:[%s850 + $0x8] sm:$0xf]
      %v854 = vsel %vm557, %v851, 0
      %v857 = vsel %vm557, %v852, 0
      %v860 = vsel %vm564, %v849, 0
      %862 = vmatprep.subr.mxu0 0.0
      %863 = vmatpush1.msra.mxu0 0.0
      %864 = vmatprep.subr.mxu0 0.0
      %865 = vmatpush1.msra.mxu0 0.0
      %866 = vmatprep.subr.mxu0 0.0
      %867 = vmatpush1.msra.mxu0 0.0
      %868 = vmatprep.subr.mxu0 0.0
      %869 = vmatpush1.msra.mxu0 0.0
      %870 = vmatprep.subr.mxu0 0.0
      %871 = vmatpush1.msra.mxu0 0.0
      %872 = vmatprep.subr.mxu0 0.0
      %873 = vmatpush1.msra.mxu0 0.0
      %874 = vmatprep.subr.mxu0 0.0
      %875 = vmatpush1.msra.mxu0 0.0
      %876 = vmatprep.subr.mxu0 0.0
      %877 = vmatpush1.msra.mxu0 0.0
      %878 = vmatprep.subr.mxu0 0.0
      %879 = vmatpush1.msra.mxu0 0.0
      %880 = vmatprep.subr.mxu0 0.0
      %881 = vmatpush1.msra.mxu0 0.0
      %882 = vmatprep.subr.mxu0 0.0
      %883 = vmatpush1.msra.mxu0 0.0
      %884 = vmatprep.subr.mxu0 0.0
      %885 = vmatpush1.msra.mxu0 0.0
      %886 = vmatprep.subr.mxu0 0.0
      %887 = vmatpush1.msra.mxu0 0.0
      %888 = vmatprep.subr.mxu0 0.0
      %889 = vmatpush1.msra.mxu0 0.0
      %890 = vmatprep.subr.mxu0 0.0
      %891 = vmatpush1.msra.mxu0 0.0
      %892 = vmatprep.subr.mxu0 0.0
      %893 = vmatpush1.msra.mxu0 %v860
      %894 = vmatprep.subr.mxu0 0.0
      %895 = vmatpush2.msra.mxu0 0.0
      %896 = vmatprep.subr.mxu0 0.0
      %897 = vmatpush2.msra.mxu0 0.0
      %898 = vmatprep.subr.mxu0 0.0
      %899 = vmatpush2.msra.mxu0 0.0
      %900 = vmatprep.subr.mxu0 0.0
      %901 = vmatpush2.msra.mxu0 0.0
      %902 = vmatprep.subr.mxu0 0.0
      %903 = vmatpush2.msra.mxu0 0.0
      %904 = vmatprep.subr.mxu0 0.0
      %905 = vmatpush2.msra.mxu0 0.0
      %906 = vmatprep.subr.mxu0 0.0
      %907 = vmatpush2.msra.mxu0 0.0
      %908 = vmatprep.subr.mxu0 0.0
      %909 = vmatpush2.msra.mxu0 0.0
      %910 = vmatprep.subr.mxu0 0.0
      %911 = vmatpush2.msra.mxu0 0.0
      %912 = vmatprep.subr.mxu0 0.0
      %913 = vmatpush2.msra.mxu0 0.0
      %914 = vmatprep.subr.mxu0 0.0
      %915 = vmatpush2.msra.mxu0 0.0
      %916 = vmatprep.subr.mxu0 0.0
      %917 = vmatpush2.msra.mxu0 0.0
      %918 = vmatprep.subr.mxu0 0.0
      %919 = vmatpush2.msra.mxu0 0.0
      %920 = vmatprep.subr.mxu0 0.0
      %921 = vmatpush2.msra.mxu0 0.0
      %922 = vmatprep.subr.mxu0 0.0
      %923 = vmatpush2.msra.mxu0 0.0
      %924 = vmatprep.subr.mxu0 0.0
      %925 = vmatpush2.msra.mxu0 0.0
      %926 = vmatprep.mubr.f32.mxu0 0.0
      %927 = vmatmul.mubr.f32.gmra.mxu0 %v854
      %v928 = vpop.f32.mrf.mxu0
      %v929 = vadd.f32 0.0, %v928
      %v930 = vpop.f32.mrf.mxu0
      %931 = vmatprep.mubr.f32.mxu0 0.0
      %932 = vmatmul.mubr.f32.gmra.mxu0 %v857
      %v933 = vpop.f32.mrf.mxu0
      %v934 = vadd.f32 0.0, %v933
      %v935 = vpop.f32.mrf.mxu0
      %936 = vdwg.mxu0
      %v937 = vadd.f32 %v719, %v929
      %v938 = vadd.f32 %v724, %v934
      %v939 = vld [vmem:[%s164] sm:$0xff]
      %v940 = vld [vmem:[%s164 + $0x10] sm:$0xff]
      %v941 = vld [vmem:[%s164 + $0x20] sm:$0xff]
      %v942 = vld [vmem:[%s164 + $0x30] sm:$0xff]
      %v943 = vcombine.low %v939, %v941
      %v944 = vcombine.high %v939, %v941
      %v946 = vunpack.c.l.s4 1983009808
      %v947 = vunpack.c.0.s8 %v946
      %v948 = vlaneseq
      %v949 = vshrl.u32 %v948, 7
      %v950 = vsub.s32 %v947, %v949
      %v951 = vrot.slane %v943, %v950
      %v953 = vunpack.c.l.s4 1983009808
      %v954 = vunpack.c.0.s8 %v953
      %v955 = vlaneseq
      %v956 = vshrl.u32 %v955, 7
      %v957 = vsub.s32 %v954, %v956
      %v958 = vrot.slane %v944, %v957
      %v959 = vcombine.low %v940, %v942
      %v960 = vcombine.high %v940, %v942
      %v962 = vunpack.c.l.s4 1983009808
      %v963 = vunpack.c.0.s8 %v962
      %v964 = vlaneseq
      %v965 = vshrl.u32 %v964, 7
      %v966 = vsub.s32 %v963, %v965
      %v967 = vrot.slane %v959, %v966
      %v969 = vunpack.c.l.s4 1983009808
      %v970 = vunpack.c.0.s8 %v969
      %v971 = vlaneseq
      %v972 = vshrl.u32 %v971, 7
      %v973 = vsub.s32 %v970, %v972
      %v974 = vrot.slane %v960, %v973
      %v975 = vcombine.low %v951, %v967
      %v976 = vcombine.high %v951, %v967
      %v978 = vunpack.c.l.s4 1934713408
      %v979 = vunpack.c.0.s8 %v978
      %v980 = vlaneseq
      %v981 = vshrl.u32 %v980, 7
      %v982 = vsub.s32 %v979, %v981
      %v983 = vrot.slane %v975, %v982
      %v985 = vunpack.c.l.s4 1934713408
      %v986 = vunpack.c.0.s8 %v985
      %v987 = vlaneseq
      %v988 = vshrl.u32 %v987, 7
      %v989 = vsub.s32 %v986, %v988
      %v990 = vrot.slane %v976, %v989
      %v991 = vcombine.low %v958, %v974
      %v992 = vcombine.high %v958, %v974
      %v994 = vunpack.c.l.s4 1934713408
      %v995 = vunpack.c.0.s8 %v994
      %v996 = vlaneseq
      %v997 = vshrl.u32 %v996, 7
      %v998 = vsub.s32 %v995, %v997
      %v999 = vrot.slane %v991, %v998
      %v1001 = vunpack.c.l.s4 1934713408
      %v1002 = vunpack.c.0.s8 %v1001
      %v1003 = vlaneseq
      %v1004 = vshrl.u32 %v1003, 7
      %v1005 = vsub.s32 %v1002, %v1004
      %v1006 = vrot.slane %v992, %v1005
      %v1007 = vcombine.high %v983, 0.0
      %v1008 = vcombine.high %v990, 0.0
      %v1009 = vcombine.high %v999, 0.0
      %v1010 = vcombine.high %v1006, 0.0
      %1012 = vrot.lane.b32.xlu0 %v1007, 8
      %v1013 = vpop.permute.xlu0 %1012
      %1016 = vrot.lane.b32.xlu0 %v990, 16
      %v1017 = vpop.permute.xlu0 %1016
      %1020 = vrot.lane.b32.xlu0 %v1008, 24
      %v1021 = vpop.permute.xlu0 %1020
      %1024 = vrot.lane.b32.xlu0 %v999, 32
      %v1025 = vpop.permute.xlu0 %1024
      %1028 = vrot.lane.b32.xlu0 %v1009, 40
      %v1029 = vpop.permute.xlu0 %1028
      %1032 = vrot.lane.b32.xlu0 %v1006, 48
      %v1033 = vpop.permute.xlu0 %1032
      %1036 = vrot.lane.b32.xlu0 %v1010, 56
      %v1037 = vpop.permute.xlu0 %1036
      %v1039 = vsel %vm321, %v983, %v1013
      %v1040 = vsel %vm323, %v1039, %v1017
      %v1041 = vsel %vm325, %v1040, %v1021
      %v1042 = vsel %vm327, %v1041, %v1025
      %v1043 = vsel %vm329, %v1042, %v1029
      %v1044 = vsel %vm331, %v1043, %v1033
      %v1045 = vsel %vm333, %v1044, %v1037
      %s1046 = scalar_lea.vmem %s1, 48
      %v1047 = vld [vmem:[%s1046] sm:$0xff]
      %v1048 = vld [vmem:[%s1046 + $0x8] sm:$0xf]
      %v1050 = vsel %vm557, %v1047, 0
      %v1053 = vsel %vm557, %v1048, 0
      %v1056 = vsel %vm564, %v1045, 0
      %1058 = vmatprep.subr.mxu0 0.0
      %1059 = vmatpush1.msra.mxu0 0.0
      %1060 = vmatprep.subr.mxu0 0.0
      %1061 = vmatpush1.msra.mxu0 0.0
      %1062 = vmatprep.subr.mxu0 0.0
      %1063 = vmatpush1.msra.mxu0 0.0
      %1064 = vmatprep.subr.mxu0 0.0
      %1065 = vmatpush1.msra.mxu0 0.0
      %1066 = vmatprep.subr.mxu0 0.0
      %1067 = vmatpush1.msra.mxu0 0.0
      %1068 = vmatprep.subr.mxu0 0.0
      %1069 = vmatpush1.msra.mxu0 0.0
      %1070 = vmatprep.subr.mxu0 0.0
      %1071 = vmatpush1.msra.mxu0 0.0
      %1072 = vmatprep.subr.mxu0 0.0
      %1073 = vmatpush1.msra.mxu0 0.0
      %1074 = vmatprep.subr.mxu0 0.0
      %1075 = vmatpush1.msra.mxu0 0.0
      %1076 = vmatprep.subr.mxu0 0.0
      %1077 = vmatpush1.msra.mxu0 0.0
      %1078 = vmatprep.subr.mxu0 0.0
      %1079 = vmatpush1.msra.mxu0 0.0
      %1080 = vmatprep.subr.mxu0 0.0
      %1081 = vmatpush1.msra.mxu0 0.0
      %1082 = vmatprep.subr.mxu0 0.0
      %1083 = vmatpush1.msra.mxu0 0.0
      %1084 = vmatprep.subr.mxu0 0.0
      %1085 = vmatpush1.msra.mxu0 0.0
      %1086 = vmatprep.subr.mxu0 0.0
      %1087 = vmatpush1.msra.mxu0 0.0
      %1088 = vmatprep.subr.mxu0 0.0
      %1089 = vmatpush1.msra.mxu0 %v1056
      %1090 = vmatprep.subr.mxu0 0.0
      %1091 = vmatpush2.msra.mxu0 0.0
      %1092 = vmatprep.subr.mxu0 0.0
      %1093 = vmatpush2.msra.mxu0 0.0
      %1094 = vmatprep.subr.mxu0 0.0
      %1095 = vmatpush2.msra.mxu0 0.0
      %1096 = vmatprep.subr.mxu0 0.0
      %1097 = vmatpush2.msra.mxu0 0.0
      %1098 = vmatprep.subr.mxu0 0.0
      %1099 = vmatpush2.msra.mxu0 0.0
      %1100 = vmatprep.subr.mxu0 0.0
      %1101 = vmatpush2.msra.mxu0 0.0
      %1102 = vmatprep.subr.mxu0 0.0
      %1103 = vmatpush2.msra.mxu0 0.0
      %1104 = vmatprep.subr.mxu0 0.0
      %1105 = vmatpush2.msra.mxu0 0.0
      %1106 = vmatprep.subr.mxu0 0.0
      %1107 = vmatpush2.msra.mxu0 0.0
      %1108 = vmatprep.subr.mxu0 0.0
      %1109 = vmatpush2.msra.mxu0 0.0
      %1110 = vmatprep.subr.mxu0 0.0
      %1111 = vmatpush2.msra.mxu0 0.0
      %1112 = vmatprep.subr.mxu0 0.0
      %1113 = vmatpush2.msra.mxu0 0.0
      %1114 = vmatprep.subr.mxu0 0.0
      %1115 = vmatpush2.msra.mxu0 0.0
      %1116 = vmatprep.subr.mxu0 0.0
      %1117 = vmatpush2.msra.mxu0 0.0
      %1118 = vmatprep.subr.mxu0 0.0
      %1119 = vmatpush2.msra.mxu0 0.0
      %1120 = vmatprep.subr.mxu0 0.0
      %1121 = vmatpush2.msra.mxu0 0.0
      %1122 = vmatprep.mubr.f32.mxu0 0.0
      %1123 = vmatmul.mubr.f32.gmra.mxu0 %v1050
      %v1124 = vpop.f32.mrf.mxu0
      %v1125 = vadd.f32 0.0, %v1124
      %v1126 = vpop.f32.mrf.mxu0
      %1127 = vmatprep.mubr.f32.mxu0 0.0
      %1128 = vmatmul.mubr.f32.gmra.mxu0 %v1053
      %v1129 = vpop.f32.mrf.mxu0
      %v1130 = vadd.f32 0.0, %v1129
      %v1131 = vpop.f32.mrf.mxu0
      %1132 = vdwg.mxu0
      %v1133 = vadd.f32 %v937, %v1125
      %v1134 = vadd.f32 %v938, %v1130
      %v1135 = vcombine.low %v159, %v161
      %v1136 = vcombine.high %v159, %v161
      %v1138 = vunpack.c.l.s4 1983009808
      %v1139 = vunpack.c.0.s8 %v1138
      %v1140 = vlaneseq
      %v1141 = vshrl.u32 %v1140, 7
      %v1142 = vsub.s32 %v1139, %v1141
      %v1143 = vrot.slane %v1135, %v1142
      %v1145 = vunpack.c.l.s4 1983009808
      %v1146 = vunpack.c.0.s8 %v1145
      %v1147 = vlaneseq
      %v1148 = vshrl.u32 %v1147, 7
      %v1149 = vsub.s32 %v1146, %v1148
      %v1150 = vrot.slane %v1136, %v1149
      %v1151 = vcombine.low %v160, %v162
      %v1152 = vcombine.high %v160, %v162
      %v1154 = vunpack.c.l.s4 1983009808
      %v1155 = vunpack.c.0.s8 %v1154
      %v1156 = vlaneseq
      %v1157 = vshrl.u32 %v1156, 7
      %v1158 = vsub.s32 %v1155, %v1157
      %v1159 = vrot.slane %v1151, %v1158
      %v1161 = vunpack.c.l.s4 1983009808
      %v1162 = vunpack.c.0.s8 %v1161
      %v1163 = vlaneseq
      %v1164 = vshrl.u32 %v1163, 7
      %v1165 = vsub.s32 %v1162, %v1164
      %v1166 = vrot.slane %v1152, %v1165
      %v1167 = vcombine.low %v1143, %v1159
      %v1168 = vcombine.high %v1143, %v1159
      %v1170 = vunpack.c.l.s4 1934713408
      %v1171 = vunpack.c.0.s8 %v1170
      %v1172 = vlaneseq
      %v1173 = vshrl.u32 %v1172, 7
      %v1174 = vsub.s32 %v1171, %v1173
      %v1175 = vrot.slane %v1167, %v1174
      %v1177 = vunpack.c.l.s4 1934713408
      %v1178 = vunpack.c.0.s8 %v1177
      %v1179 = vlaneseq
      %v1180 = vshrl.u32 %v1179, 7
      %v1181 = vsub.s32 %v1178, %v1180
      %v1182 = vrot.slane %v1168, %v1181
      %v1183 = vcombine.low %v1150, %v1166
      %v1184 = vcombine.high %v1150, %v1166
      %v1186 = vunpack.c.l.s4 1934713408
      %v1187 = vunpack.c.0.s8 %v1186
      %v1188 = vlaneseq
      %v1189 = vshrl.u32 %v1188, 7
      %v1190 = vsub.s32 %v1187, %v1189
      %v1191 = vrot.slane %v1183, %v1190
      %v1193 = vunpack.c.l.s4 1934713408
      %v1194 = vunpack.c.0.s8 %v1193
      %v1195 = vlaneseq
      %v1196 = vshrl.u32 %v1195, 7
      %v1197 = vsub.s32 %v1194, %v1196
      %v1198 = vrot.slane %v1184, %v1197
      %v1199 = vcombine.high %v1175, 0.0
      %v1200 = vcombine.high %v1182, 0.0
      %v1201 = vcombine.high %v1191, 0.0
      %v1202 = vcombine.high %v1198, 0.0
      %1204 = vrot.lane.b32.xlu0 %v1199, 8
      %v1205 = vpop.permute.xlu0 %1204
      %1208 = vrot.lane.b32.xlu0 %v1182, 16
      %v1209 = vpop.permute.xlu0 %1208
      %1212 = vrot.lane.b32.xlu0 %v1200, 24
      %v1213 = vpop.permute.xlu0 %1212
      %1216 = vrot.lane.b32.xlu0 %v1191, 32
      %v1217 = vpop.permute.xlu0 %1216
      %1220 = vrot.lane.b32.xlu0 %v1201, 40
      %v1221 = vpop.permute.xlu0 %1220
      %1224 = vrot.lane.b32.xlu0 %v1198, 48
      %v1225 = vpop.permute.xlu0 %1224
      %1228 = vrot.lane.b32.xlu0 %v1202, 56
      %v1229 = vpop.permute.xlu0 %1228
      %v1231 = vsel %vm321, %v1175, %v1205
      %v1232 = vsel %vm323, %v1231, %v1209
      %v1233 = vsel %vm325, %v1232, %v1213
      %v1234 = vsel %vm327, %v1233, %v1217
      %v1235 = vsel %vm329, %v1234, %v1221
      %v1236 = vsel %vm331, %v1235, %v1225
      %v1237 = vsel %vm333, %v1236, %v1229
      %s1238 = scalar_lea.vmem %s1, 64
      %v1239 = vld [vmem:[%s1238] sm:$0xff]
      %v1240 = vld [vmem:[%s1238 + $0x8] sm:$0xf]
      %v1242 = vsel %vm557, %v1239, 0
      %v1245 = vsel %vm557, %v1240, 0
      %v1248 = vsel %vm564, %v1237, 0
      %1250 = vmatprep.subr.mxu0 0.0
      %1251 = vmatpush1.msra.mxu0 0.0
      %1252 = vmatprep.subr.mxu0 0.0
      %1253 = vmatpush1.msra.mxu0 0.0
      %1254 = vmatprep.subr.mxu0 0.0
      %1255 = vmatpush1.msra.mxu0 0.0
      %1256 = vmatprep.subr.mxu0 0.0
      %1257 = vmatpush1.msra.mxu0 0.0
      %1258 = vmatprep.subr.mxu0 0.0
      %1259 = vmatpush1.msra.mxu0 0.0
      %1260 = vmatprep.subr.mxu0 0.0
      %1261 = vmatpush1.msra.mxu0 0.0
      %1262 = vmatprep.subr.mxu0 0.0
      %1263 = vmatpush1.msra.mxu0 0.0
      %1264 = vmatprep.subr.mxu0 0.0
      %1265 = vmatpush1.msra.mxu0 0.0
      %1266 = vmatprep.subr.mxu0 0.0
      %1267 = vmatpush1.msra.mxu0 0.0
      %1268 = vmatprep.subr.mxu0 0.0
      %1269 = vmatpush1.msra.mxu0 0.0
      %1270 = vmatprep.subr.mxu0 0.0
      %1271 = vmatpush1.msra.mxu0 0.0
      %1272 = vmatprep.subr.mxu0 0.0
      %1273 = vmatpush1.msra.mxu0 0.0
      %1274 = vmatprep.subr.mxu0 0.0
      %1275 = vmatpush1.msra.mxu0 0.0
      %1276 = vmatprep.subr.mxu0 0.0
      %1277 = vmatpush1.msra.mxu0 0.0
      %1278 = vmatprep.subr.mxu0 0.0
      %1279 = vmatpush1.msra.mxu0 0.0
      %1280 = vmatprep.subr.mxu0 0.0
      %1281 = vmatpush1.msra.mxu0 %v1248
      %1282 = vmatprep.subr.mxu0 0.0
      %1283 = vmatpush2.msra.mxu0 0.0
      %1284 = vmatprep.subr.mxu0 0.0
      %1285 = vmatpush2.msra.mxu0 0.0
      %1286 = vmatprep.subr.mxu0 0.0
      %1287 = vmatpush2.msra.mxu0 0.0
      %1288 = vmatprep.subr.mxu0 0.0
      %1289 = vmatpush2.msra.mxu0 0.0
      %1290 = vmatprep.subr.mxu0 0.0
      %1291 = vmatpush2.msra.mxu0 0.0
      %1292 = vmatprep.subr.mxu0 0.0
      %1293 = vmatpush2.msra.mxu0 0.0
      %1294 = vmatprep.subr.mxu0 0.0
      %1295 = vmatpush2.msra.mxu0 0.0
      %1296 = vmatprep.subr.mxu0 0.0
      %1297 = vmatpush2.msra.mxu0 0.0
      %1298 = vmatprep.subr.mxu0 0.0
      %1299 = vmatpush2.msra.mxu0 0.0
      %1300 = vmatprep.subr.mxu0 0.0
      %1301 = vmatpush2.msra.mxu0 0.0
      %1302 = vmatprep.subr.mxu0 0.0
      %1303 = vmatpush2.msra.mxu0 0.0
      %1304 = vmatprep.subr.mxu0 0.0
      %1305 = vmatpush2.msra.mxu0 0.0
      %1306 = vmatprep.subr.mxu0 0.0
      %1307 = vmatpush2.msra.mxu0 0.0
      %1308 = vmatprep.subr.mxu0 0.0
      %1309 = vmatpush2.msra.mxu0 0.0
      %1310 = vmatprep.subr.mxu0 0.0
      %1311 = vmatpush2.msra.mxu0 0.0
      %1312 = vmatprep.subr.mxu0 0.0
      %1313 = vmatpush2.msra.mxu0 0.0
      %1314 = vmatprep.mubr.f32.mxu0 0.0
      %1315 = vmatmul.mubr.f32.gmra.mxu0 %v1242
      %v1316 = vpop.f32.mrf.mxu0
      %v1317 = vadd.f32 0.0, %v1316
      %v1318 = vpop.f32.mrf.mxu0
      %1319 = vmatprep.mubr.f32.mxu0 0.0
      %1320 = vmatmul.mubr.f32.gmra.mxu0 %v1245
      %v1321 = vpop.f32.mrf.mxu0
      %v1322 = vadd.f32 0.0, %v1321
      %v1323 = vpop.f32.mrf.mxu0
      %1324 = vdwg.mxu0
      %v1325 = vadd.f32 %v1133, %v1317
      %v1326 = vadd.f32 %v1134, %v1322
      %v1327 = vcombine.low %v174, %v178
      %v1328 = vcombine.high %v174, %v178
      %v1330 = vunpack.c.l.s4 1983009808
      %v1331 = vunpack.c.0.s8 %v1330
      %v1332 = vlaneseq
      %v1333 = vshrl.u32 %v1332, 7
      %v1334 = vsub.s32 %v1331, %v1333
      %v1335 = vrot.slane %v1327, %v1334
      %v1337 = vunpack.c.l.s4 1983009808
      %v1338 = vunpack.c.0.s8 %v1337
      %v1339 = vlaneseq
      %v1340 = vshrl.u32 %v1339, 7
      %v1341 = vsub.s32 %v1338, %v1340
      %v1342 = vrot.slane %v1328, %v1341
      %v1343 = vcombine.low %v176, %v180
      %v1344 = vcombine.high %v176, %v180
      %v1346 = vunpack.c.l.s4 1983009808
      %v1347 = vunpack.c.0.s8 %v1346
      %v1348 = vlaneseq
      %v1349 = vshrl.u32 %v1348, 7
      %v1350 = vsub.s32 %v1347, %v1349
      %v1351 = vrot.slane %v1343, %v1350
      %v1353 = vunpack.c.l.s4 1983009808
      %v1354 = vunpack.c.0.s8 %v1353
      %v1355 = vlaneseq
      %v1356 = vshrl.u32 %v1355, 7
      %v1357 = vsub.s32 %v1354, %v1356
      %v1358 = vrot.slane %v1344, %v1357
      %v1359 = vcombine.low %v1335, %v1351
      %v1360 = vcombine.high %v1335, %v1351
      %v1362 = vunpack.c.l.s4 1934713408
      %v1363 = vunpack.c.0.s8 %v1362
      %v1364 = vlaneseq
      %v1365 = vshrl.u32 %v1364, 7
      %v1366 = vsub.s32 %v1363, %v1365
      %v1367 = vrot.slane %v1359, %v1366
      %v1369 = vunpack.c.l.s4 1934713408
      %v1370 = vunpack.c.0.s8 %v1369
      %v1371 = vlaneseq
      %v1372 = vshrl.u32 %v1371, 7
      %v1373 = vsub.s32 %v1370, %v1372
      %v1374 = vrot.slane %v1360, %v1373
      %v1375 = vcombine.low %v1342, %v1358
      %v1376 = vcombine.high %v1342, %v1358
      %v1378 = vunpack.c.l.s4 1934713408
      %v1379 = vunpack.c.0.s8 %v1378
      %v1380 = vlaneseq
      %v1381 = vshrl.u32 %v1380, 7
      %v1382 = vsub.s32 %v1379, %v1381
      %v1383 = vrot.slane %v1375, %v1382
      %v1385 = vunpack.c.l.s4 1934713408
      %v1386 = vunpack.c.0.s8 %v1385
      %v1387 = vlaneseq
      %v1388 = vshrl.u32 %v1387, 7
      %v1389 = vsub.s32 %v1386, %v1388
      %v1390 = vrot.slane %v1376, %v1389
      %v1391 = vcombine.high %v1367, 0.0
      %v1392 = vcombine.high %v1374, 0.0
      %v1393 = vcombine.high %v1383, 0.0
      %v1394 = vcombine.high %v1390, 0.0
      %1396 = vrot.lane.b32.xlu0 %v1391, 8
      %v1397 = vpop.permute.xlu0 %1396
      %1400 = vrot.lane.b32.xlu0 %v1374, 16
      %v1401 = vpop.permute.xlu0 %1400
      %1404 = vrot.lane.b32.xlu0 %v1392, 24
      %v1405 = vpop.permute.xlu0 %1404
      %1408 = vrot.lane.b32.xlu0 %v1383, 32
      %v1409 = vpop.permute.xlu0 %1408
      %1412 = vrot.lane.b32.xlu0 %v1393, 40
      %v1413 = vpop.permute.xlu0 %1412
      %1416 = vrot.lane.b32.xlu0 %v1390, 48
      %v1417 = vpop.permute.xlu0 %1416
      %1420 = vrot.lane.b32.xlu0 %v1394, 56
      %v1421 = vpop.permute.xlu0 %1420
      %v1423 = vsel %vm321, %v1367, %v1397
      %v1424 = vsel %vm323, %v1423, %v1401
      %v1425 = vsel %vm325, %v1424, %v1405
      %v1426 = vsel %vm327, %v1425, %v1409
      %v1427 = vsel %vm329, %v1426, %v1413
      %v1428 = vsel %vm331, %v1427, %v1417
      %v1429 = vsel %vm333, %v1428, %v1421
      %s1430 = scalar_lea.vmem %s1, 80
      %v1431 = vld [vmem:[%s1430] sm:$0xff]
      %v1432 = vld [vmem:[%s1430 + $0x8] sm:$0xf]
      %v1434 = vsel %vm557, %v1431, 0
      %v1437 = vsel %vm557, %v1432, 0
      %v1440 = vsel %vm564, %v1429, 0
      %1442 = vmatprep.subr.mxu0 0.0
      %1443 = vmatpush1.msra.mxu0 0.0
      %1444 = vmatprep.subr.mxu0 0.0
      %1445 = vmatpush1.msra.mxu0 0.0
      %1446 = vmatprep.subr.mxu0 0.0
      %1447 = vmatpush1.msra.mxu0 0.0
      %1448 = vmatprep.subr.mxu0 0.0
      %1449 = vmatpush1.msra.mxu0 0.0
      %1450 = vmatprep.subr.mxu0 0.0
      %1451 = vmatpush1.msra.mxu0 0.0
      %1452 = vmatprep.subr.mxu0 0.0
      %1453 = vmatpush1.msra.mxu0 0.0
      %1454 = vmatprep.subr.mxu0 0.0
      %1455 = vmatpush1.msra.mxu0 0.0
      %1456 = vmatprep.subr.mxu0 0.0
      %1457 = vmatpush1.msra.mxu0 0.0
      %1458 = vmatprep.subr.mxu0 0.0
      %1459 = vmatpush1.msra.mxu0 0.0
      %1460 = vmatprep.subr.mxu0 0.0
      %1461 = vmatpush1.msra.mxu0 0.0
      %1462 = vmatprep.subr.mxu0 0.0
      %1463 = vmatpush1.msra.mxu0 0.0
      %1464 = vmatprep.subr.mxu0 0.0
      %1465 = vmatpush1.msra.mxu0 0.0
      %1466 = vmatprep.subr.mxu0 0.0
      %1467 = vmatpush1.msra.mxu0 0.0
      %1468 = vmatprep.subr.mxu0 0.0
      %1469 = vmatpush1.msra.mxu0 0.0
      %1470 = vmatprep.subr.mxu0 0.0
      %1471 = vmatpush1.msra.mxu0 0.0
      %1472 = vmatprep.subr.mxu0 0.0
      %1473 = vmatpush1.msra.mxu0 %v1440
      %1474 = vmatprep.subr.mxu0 0.0
      %1475 = vmatpush2.msra.mxu0 0.0
      %1476 = vmatprep.subr.mxu0 0.0
      %1477 = vmatpush2.msra.mxu0 0.0
      %1478 = vmatprep.subr.mxu0 0.0
      %1479 = vmatpush2.msra.mxu0 0.0
      %1480 = vmatprep.subr.mxu0 0.0
      %1481 = vmatpush2.msra.mxu0 0.0
      %1482 = vmatprep.subr.mxu0 0.0
      %1483 = vmatpush2.msra.mxu0 0.0
      %1484 = vmatprep.subr.mxu0 0.0
      %1485 = vmatpush2.msra.mxu0 0.0
      %1486 = vmatprep.subr.mxu0 0.0
      %1487 = vmatpush2.msra.mxu0 0.0
      %1488 = vmatprep.subr.mxu0 0.0
      %1489 = vmatpush2.msra.mxu0 0.0
      %1490 = vmatprep.subr.mxu0 0.0
      %1491 = vmatpush2.msra.mxu0 0.0
      %1492 = vmatprep.subr.mxu0 0.0
      %1493 = vmatpush2.msra.mxu0 0.0
      %1494 = vmatprep.subr.mxu0 0.0
      %1495 = vmatpush2.msra.mxu0 0.0
      %1496 = vmatprep.subr.mxu0 0.0
      %1497 = vmatpush2.msra.mxu0 0.0
      %1498 = vmatprep.subr.mxu0 0.0
      %1499 = vmatpush2.msra.mxu0 0.0
      %1500 = vmatprep.subr.mxu0 0.0
      %1501 = vmatpush2.msra.mxu0 0.0
      %1502 = vmatprep.subr.mxu0 0.0
      %1503 = vmatpush2.msra.mxu0 0.0
      %1504 = vmatprep.subr.mxu0 0.0
      %1505 = vmatpush2.msra.mxu0 0.0
      %1506 = vmatprep.mubr.f32.mxu0 0.0
      %1507 = vmatmul.mubr.f32.gmra.mxu0 %v1434
      %v1508 = vpop.f32.mrf.mxu0
      %v1509 = vadd.f32 0.0, %v1508
      %v1510 = vpop.f32.mrf.mxu0
      %1511 = vmatprep.mubr.f32.mxu0 0.0
      %1512 = vmatmul.mubr.f32.gmra.mxu0 %v1437
      %v1513 = vpop.f32.mrf.mxu0
      %v1514 = vadd.f32 0.0, %v1513
      %v1515 = vpop.f32.mrf.mxu0
      %1516 = vdwg.mxu0
      %v1517 = vadd.f32 %v1325, %v1509
      %v1518 = vadd.f32 %v1326, %v1514
      %v1519 = vld [vmem:[%s196] sm:$0xff]
      %v1520 = vld [vmem:[%s196 + $0x10] sm:$0xff]
      %v1521 = vld [vmem:[%s196 + $0x20] sm:$0xff]
      %v1522 = vld [vmem:[%s196 + $0x30] sm:$0xff]
      %v1523 = vcombine.low %v1519, %v1521
      %v1524 = vcombine.high %v1519, %v1521
      %v1526 = vunpack.c.l.s4 1983009808
      %v1527 = vunpack.c.0.s8 %v1526
      %v1528 = vlaneseq
      %v1529 = vshrl.u32 %v1528, 7
      %v1530 = vsub.s32 %v1527, %v1529
      %v1531 = vrot.slane %v1523, %v1530
      %v1533 = vunpack.c.l.s4 1983009808
      %v1534 = vunpack.c.0.s8 %v1533
      %v1535 = vlaneseq
      %v1536 = vshrl.u32 %v1535, 7
      %v1537 = vsub.s32 %v1534, %v1536
      %v1538 = vrot.slane %v1524, %v1537
      %v1539 = vcombine.low %v1520, %v1522
      %v1540 = vcombine.high %v1520, %v1522
      %v1542 = vunpack.c.l.s4 1983009808
      %v1543 = vunpack.c.0.s8 %v1542
      %v1544 = vlaneseq
      %v1545 = vshrl.u32 %v1544, 7
      %v1546 = vsub.s32 %v1543, %v1545
      %v1547 = vrot.slane %v1539, %v1546
      %v1549 = vunpack.c.l.s4 1983009808
      %v1550 = vunpack.c.0.s8 %v1549
      %v1551 = vlaneseq
      %v1552 = vshrl.u32 %v1551, 7
      %v1553 = vsub.s32 %v1550, %v1552
      %v1554 = vrot.slane %v1540, %v1553
      %v1555 = vcombine.low %v1531, %v1547
      %v1556 = vcombine.high %v1531, %v1547
      %v1558 = vunpack.c.l.s4 1934713408
      %v1559 = vunpack.c.0.s8 %v1558
      %v1560 = vlaneseq
      %v1561 = vshrl.u32 %v1560, 7
      %v1562 = vsub.s32 %v1559, %v1561
      %v1563 = vrot.slane %v1555, %v1562
      %v1565 = vunpack.c.l.s4 1934713408
      %v1566 = vunpack.c.0.s8 %v1565
      %v1567 = vlaneseq
      %v1568 = vshrl.u32 %v1567, 7
      %v1569 = vsub.s32 %v1566, %v1568
      %v1570 = vrot.slane %v1556, %v1569
      %v1571 = vcombine.low %v1538, %v1554
      %v1572 = vcombine.high %v1538, %v1554
      %v1574 = vunpack.c.l.s4 1934713408
      %v1575 = vunpack.c.0.s8 %v1574
      %v1576 = vlaneseq
      %v1577 = vshrl.u32 %v1576, 7
      %v1578 = vsub.s32 %v1575, %v1577
      %v1579 = vrot.slane %v1571, %v1578
      %v1581 = vunpack.c.l.s4 1934713408
      %v1582 = vunpack.c.0.s8 %v1581
      %v1583 = vlaneseq
      %v1584 = vshrl.u32 %v1583, 7
      %v1585 = vsub.s32 %v1582, %v1584
      %v1586 = vrot.slane %v1572, %v1585
      %v1587 = vcombine.high %v1563, 0.0
      %v1588 = vcombine.high %v1570, 0.0
      %v1589 = vcombine.high %v1579, 0.0
      %v1590 = vcombine.high %v1586, 0.0
      %1592 = vrot.lane.b32.xlu0 %v1587, 8
      %v1593 = vpop.permute.xlu0 %1592
      %1596 = vrot.lane.b32.xlu0 %v1570, 16
      %v1597 = vpop.permute.xlu0 %1596
      %1600 = vrot.lane.b32.xlu0 %v1588, 24
      %v1601 = vpop.permute.xlu0 %1600
      %1604 = vrot.lane.b32.xlu0 %v1579, 32
      %v1605 = vpop.permute.xlu0 %1604
      %1608 = vrot.lane.b32.xlu0 %v1589, 40
      %v1609 = vpop.permute.xlu0 %1608
      %1612 = vrot.lane.b32.xlu0 %v1586, 48
      %v1613 = vpop.permute.xlu0 %1612
      %1616 = vrot.lane.b32.xlu0 %v1590, 56
      %v1617 = vpop.permute.xlu0 %1616
      %v1619 = vsel %vm321, %v1563, %v1593
      %v1620 = vsel %vm323, %v1619, %v1597
      %v1621 = vsel %vm325, %v1620, %v1601
      %v1622 = vsel %vm327, %v1621, %v1605
      %v1623 = vsel %vm329, %v1622, %v1609
      %v1624 = vsel %vm331, %v1623, %v1613
      %v1625 = vsel %vm333, %v1624, %v1617
      %s1626 = scalar_lea.vmem %s1, 96
      %v1627 = vld [vmem:[%s1626] sm:$0xff]
      %v1628 = vld [vmem:[%s1626 + $0x8] sm:$0xf]
      %v1630 = vsel %vm557, %v1627, 0
      %v1633 = vsel %vm557, %v1628, 0
      %v1636 = vsel %vm564, %v1625, 0
      %1638 = vmatprep.subr.mxu0 0.0
      %1639 = vmatpush1.msra.mxu0 0.0
      %1640 = vmatprep.subr.mxu0 0.0
      %1641 = vmatpush1.msra.mxu0 0.0
      %1642 = vmatprep.subr.mxu0 0.0
      %1643 = vmatpush1.msra.mxu0 0.0
      %1644 = vmatprep.subr.mxu0 0.0
      %1645 = vmatpush1.msra.mxu0 0.0
      %1646 = vmatprep.subr.mxu0 0.0
      %1647 = vmatpush1.msra.mxu0 0.0
      %1648 = vmatprep.subr.mxu0 0.0
      %1649 = vmatpush1.msra.mxu0 0.0
      %1650 = vmatprep.subr.mxu0 0.0
      %1651 = vmatpush1.msra.mxu0 0.0
      %1652 = vmatprep.subr.mxu0 0.0
      %1653 = vmatpush1.msra.mxu0 0.0
      %1654 = vmatprep.subr.mxu0 0.0
      %1655 = vmatpush1.msra.mxu0 0.0
      %1656 = vmatprep.subr.mxu0 0.0
      %1657 = vmatpush1.msra.mxu0 0.0
      %1658 = vmatprep.subr.mxu0 0.0
      %1659 = vmatpush1.msra.mxu0 0.0
      %1660 = vmatprep.subr.mxu0 0.0
      %1661 = vmatpush1.msra.mxu0 0.0
      %1662 = vmatprep.subr.mxu0 0.0
      %1663 = vmatpush1.msra.mxu0 0.0
      %1664 = vmatprep.subr.mxu0 0.0
      %1665 = vmatpush1.msra.mxu0 0.0
      %1666 = vmatprep.subr.mxu0 0.0
      %1667 = vmatpush1.msra.mxu0 0.0
      %1668 = vmatprep.subr.mxu0 0.0
      %1669 = vmatpush1.msra.mxu0 %v1636
      %1670 = vmatprep.subr.mxu0 0.0
      %1671 = vmatpush2.msra.mxu0 0.0
      %1672 = vmatprep.subr.mxu0 0.0
      %1673 = vmatpush2.msra.mxu0 0.0
      %1674 = vmatprep.subr.mxu0 0.0
      %1675 = vmatpush2.msra.mxu0 0.0
      %1676 = vmatprep.subr.mxu0 0.0
      %1677 = vmatpush2.msra.mxu0 0.0
      %1678 = vmatprep.subr.mxu0 0.0
      %1679 = vmatpush2.msra.mxu0 0.0
      %1680 = vmatprep.subr.mxu0 0.0
      %1681 = vmatpush2.msra.mxu0 0.0
      %1682 = vmatprep.subr.mxu0 0.0
      %1683 = vmatpush2.msra.mxu0 0.0
      %1684 = vmatprep.subr.mxu0 0.0
      %1685 = vmatpush2.msra.mxu0 0.0
      %1686 = vmatprep.subr.mxu0 0.0
      %1687 = vmatpush2.msra.mxu0 0.0
      %1688 = vmatprep.subr.mxu0 0.0
      %1689 = vmatpush2.msra.mxu0 0.0
      %1690 = vmatprep.subr.mxu0 0.0
      %1691 = vmatpush2.msra.mxu0 0.0
      %1692 = vmatprep.subr.mxu0 0.0
      %1693 = vmatpush2.msra.mxu0 0.0
      %1694 = vmatprep.subr.mxu0 0.0
      %1695 = vmatpush2.msra.mxu0 0.0
      %1696 = vmatprep.subr.mxu0 0.0
      %1697 = vmatpush2.msra.mxu0 0.0
      %1698 = vmatprep.subr.mxu0 0.0
      %1699 = vmatpush2.msra.mxu0 0.0
      %1700 = vmatprep.subr.mxu0 0.0
      %1701 = vmatpush2.msra.mxu0 0.0
      %1702 = vmatprep.mubr.f32.mxu0 0.0
      %1703 = vmatmul.mubr.f32.gmra.mxu0 %v1630
      %v1704 = vpop.f32.mrf.mxu0
      %v1705 = vadd.f32 0.0, %v1704
      %v1706 = vpop.f32.mrf.mxu0
      %1707 = vmatprep.mubr.f32.mxu0 0.0
      %1708 = vmatmul.mubr.f32.gmra.mxu0 %v1633
      %v1709 = vpop.f32.mrf.mxu0
      %v1710 = vadd.f32 0.0, %v1709
      %v1711 = vpop.f32.mrf.mxu0
      %1712 = vdwg.mxu0
      %v1713 = vadd.f32 %v1517, %v1705
      %v1714 = vadd.f32 %v1518, %v1710
      %v1715 = vcombine.low %v192, %v194
      %v1716 = vcombine.high %v192, %v194
      %v1718 = vunpack.c.l.s4 1983009808
      %v1719 = vunpack.c.0.s8 %v1718
      %v1720 = vlaneseq
      %v1721 = vshrl.u32 %v1720, 7
      %v1722 = vsub.s32 %v1719, %v1721
      %v1723 = vrot.slane %v1715, %v1722
      %v1725 = vunpack.c.l.s4 1983009808
      %v1726 = vunpack.c.0.s8 %v1725
      %v1727 = vlaneseq
      %v1728 = vshrl.u32 %v1727, 7
      %v1729 = vsub.s32 %v1726, %v1728
      %v1730 = vrot.slane %v1716, %v1729
      %v1731 = vcombine.low %v193, %v195
      %v1732 = vcombine.high %v193, %v195
      %v1734 = vunpack.c.l.s4 1983009808
      %v1735 = vunpack.c.0.s8 %v1734
      %v1736 = vlaneseq
      %v1737 = vshrl.u32 %v1736, 7
      %v1738 = vsub.s32 %v1735, %v1737
      %v1739 = vrot.slane %v1731, %v1738
      %v1741 = vunpack.c.l.s4 1983009808
      %v1742 = vunpack.c.0.s8 %v1741
      %v1743 = vlaneseq
      %v1744 = vshrl.u32 %v1743, 7
      %v1745 = vsub.s32 %v1742, %v1744
      %v1746 = vrot.slane %v1732, %v1745
      %v1747 = vcombine.low %v1723, %v1739
      %v1748 = vcombine.high %v1723, %v1739
      %v1750 = vunpack.c.l.s4 1934713408
      %v1751 = vunpack.c.0.s8 %v1750
      %v1752 = vlaneseq
      %v1753 = vshrl.u32 %v1752, 7
      %v1754 = vsub.s32 %v1751, %v1753
      %v1755 = vrot.slane %v1747, %v1754
      %v1757 = vunpack.c.l.s4 1934713408
      %v1758 = vunpack.c.0.s8 %v1757
      %v1759 = vlaneseq
      %v1760 = vshrl.u32 %v1759, 7
      %v1761 = vsub.s32 %v1758, %v1760
      %v1762 = vrot.slane %v1748, %v1761
      %v1763 = vcombine.low %v1730, %v1746
      %v1764 = vcombine.high %v1730, %v1746
      %v1766 = vunpack.c.l.s4 1934713408
      %v1767 = vunpack.c.0.s8 %v1766
      %v1768 = vlaneseq
      %v1769 = vshrl.u32 %v1768, 7
      %v1770 = vsub.s32 %v1767, %v1769
      %v1771 = vrot.slane %v1763, %v1770
      %v1773 = vunpack.c.l.s4 1934713408
      %v1774 = vunpack.c.0.s8 %v1773
      %v1775 = vlaneseq
      %v1776 = vshrl.u32 %v1775, 7
      %v1777 = vsub.s32 %v1774, %v1776
      %v1778 = vrot.slane %v1764, %v1777
      %v1779 = vcombine.high %v1755, 0.0
      %v1780 = vcombine.high %v1762, 0.0
      %v1781 = vcombine.high %v1771, 0.0
      %v1782 = vcombine.high %v1778, 0.0
      %1784 = vrot.lane.b32.xlu0 %v1779, 8
      %v1785 = vpop.permute.xlu0 %1784
      %1788 = vrot.lane.b32.xlu0 %v1762, 16
      %v1789 = vpop.permute.xlu0 %1788
      %1792 = vrot.lane.b32.xlu0 %v1780, 24
      %v1793 = vpop.permute.xlu0 %1792
      %1796 = vrot.lane.b32.xlu0 %v1771, 32
      %v1797 = vpop.permute.xlu0 %1796
      %1800 = vrot.lane.b32.xlu0 %v1781, 40
      %v1801 = vpop.permute.xlu0 %1800
      %1804 = vrot.lane.b32.xlu0 %v1778, 48
      %v1805 = vpop.permute.xlu0 %1804
      %1808 = vrot.lane.b32.xlu0 %v1782, 56
      %v1809 = vpop.permute.xlu0 %1808
      %v1811 = vsel %vm321, %v1755, %v1785
      %v1812 = vsel %vm323, %v1811, %v1789
      %v1813 = vsel %vm325, %v1812, %v1793
      %v1814 = vsel %vm327, %v1813, %v1797
      %v1815 = vsel %vm329, %v1814, %v1801
      %v1816 = vsel %vm331, %v1815, %v1805
      %v1817 = vsel %vm333, %v1816, %v1809
      %s1818 = scalar_lea.vmem %s1, 112
      %v1819 = vld [vmem:[%s1818] sm:$0xff]
      %v1820 = vld [vmem:[%s1818 + $0x8] sm:$0xf]
      %v1822 = vsel %vm557, %v1819, 0
      %v1825 = vsel %vm557, %v1820, 0
      %v1828 = vsel %vm564, %v1817, 0
      %1830 = vmatprep.subr.mxu0 0.0
      %1831 = vmatpush1.msra.mxu0 0.0
      %1832 = vmatprep.subr.mxu0 0.0
      %1833 = vmatpush1.msra.mxu0 0.0
      %1834 = vmatprep.subr.mxu0 0.0
      %1835 = vmatpush1.msra.mxu0 0.0
      %1836 = vmatprep.subr.mxu0 0.0
      %1837 = vmatpush1.msra.mxu0 0.0
      %1838 = vmatprep.subr.mxu0 0.0
      %1839 = vmatpush1.msra.mxu0 0.0
      %1840 = vmatprep.subr.mxu0 0.0
      %1841 = vmatpush1.msra.mxu0 0.0
      %1842 = vmatprep.subr.mxu0 0.0
      %1843 = vmatpush1.msra.mxu0 0.0
      %1844 = vmatprep.subr.mxu0 0.0
      %1845 = vmatpush1.msra.mxu0 0.0
      %1846 = vmatprep.subr.mxu0 0.0
      %1847 = vmatpush1.msra.mxu0 0.0
      %1848 = vmatprep.subr.mxu0 0.0
      %1849 = vmatpush1.msra.mxu0 0.0
      %1850 = vmatprep.subr.mxu0 0.0
      %1851 = vmatpush1.msra.mxu0 0.0
      %1852 = vmatprep.subr.mxu0 0.0
      %1853 = vmatpush1.msra.mxu0 0.0
      %1854 = vmatprep.subr.mxu0 0.0
      %1855 = vmatpush1.msra.mxu0 0.0
      %1856 = vmatprep.subr.mxu0 0.0
      %1857 = vmatpush1.msra.mxu0 0.0
      %1858 = vmatprep.subr.mxu0 0.0
      %1859 = vmatpush1.msra.mxu0 0.0
      %1860 = vmatprep.subr.mxu0 0.0
      %1861 = vmatpush1.msra.mxu0 %v1828
      %1862 = vmatprep.subr.mxu0 0.0
      %1863 = vmatpush2.msra.mxu0 0.0
      %1864 = vmatprep.subr.mxu0 0.0
      %1865 = vmatpush2.msra.mxu0 0.0
      %1866 = vmatprep.subr.mxu0 0.0
      %1867 = vmatpush2.msra.mxu0 0.0
      %1868 = vmatprep.subr.mxu0 0.0
      %1869 = vmatpush2.msra.mxu0 0.0
      %1870 = vmatprep.subr.mxu0 0.0
      %1871 = vmatpush2.msra.mxu0 0.0
      %1872 = vmatprep.subr.mxu0 0.0
      %1873 = vmatpush2.msra.mxu0 0.0
      %1874 = vmatprep.subr.mxu0 0.0
      %1875 = vmatpush2.msra.mxu0 0.0
      %1876 = vmatprep.subr.mxu0 0.0
      %1877 = vmatpush2.msra.mxu0 0.0
      %1878 = vmatprep.subr.mxu0 0.0
      %1879 = vmatpush2.msra.mxu0 0.0
      %1880 = vmatprep.subr.mxu0 0.0
      %1881 = vmatpush2.msra.mxu0 0.0
      %1882 = vmatprep.subr.mxu0 0.0
      %1883 = vmatpush2.msra.mxu0 0.0
      %1884 = vmatprep.subr.mxu0 0.0
      %1885 = vmatpush2.msra.mxu0 0.0
      %1886 = vmatprep.subr.mxu0 0.0
      %1887 = vmatpush2.msra.mxu0 0.0
      %1888 = vmatprep.subr.mxu0 0.0
      %1889 = vmatpush2.msra.mxu0 0.0
      %1890 = vmatprep.subr.mxu0 0.0
      %1891 = vmatpush2.msra.mxu0 0.0
      %1892 = vmatprep.subr.mxu0 0.0
      %1893 = vmatpush2.msra.mxu0 0.0
      %1894 = vmatprep.mubr.f32.mxu0 0.0
      %1895 = vmatmul.mubr.f32.gmra.mxu0 %v1822
      %v1896 = vpop.f32.mrf.mxu0
      %v1897 = vadd.f32 0.0, %v1896
      %v1898 = vpop.f32.mrf.mxu0
      %1899 = vmatprep.mubr.f32.mxu0 0.0
      %1900 = vmatmul.mubr.f32.gmra.mxu0 %v1825
      %v1901 = vpop.f32.mrf.mxu0
      %v1902 = vadd.f32 0.0, %v1901
      %v1903 = vpop.f32.mrf.mxu0
      %1904 = vdwg.mxu0
      %v1905 = vadd.f32 %v1713, %v1897
      %v1906 = vadd.f32 %v1714, %v1902
      %v1907 = vcombine.low %v206, %v210
      %v1908 = vcombine.high %v206, %v210
      %v1910 = vunpack.c.l.s4 1983009808
      %v1911 = vunpack.c.0.s8 %v1910
      %v1912 = vlaneseq
      %v1913 = vshrl.u32 %v1912, 7
      %v1914 = vsub.s32 %v1911, %v1913
      %v1915 = vrot.slane %v1907, %v1914
      %v1917 = vunpack.c.l.s4 1983009808
      %v1918 = vunpack.c.0.s8 %v1917
      %v1919 = vlaneseq
      %v1920 = vshrl.u32 %v1919, 7
      %v1921 = vsub.s32 %v1918, %v1920
      %v1922 = vrot.slane %v1908, %v1921
      %v1923 = vcombine.low %v208, %v212
      %v1924 = vcombine.high %v208, %v212
      %v1926 = vunpack.c.l.s4 1983009808
      %v1927 = vunpack.c.0.s8 %v1926
      %v1928 = vlaneseq
      %v1929 = vshrl.u32 %v1928, 7
      %v1930 = vsub.s32 %v1927, %v1929
      %v1931 = vrot.slane %v1923, %v1930
      %v1933 = vunpack.c.l.s4 1983009808
      %v1934 = vunpack.c.0.s8 %v1933
      %v1935 = vlaneseq
      %v1936 = vshrl.u32 %v1935, 7
      %v1937 = vsub.s32 %v1934, %v1936
      %v1938 = vrot.slane %v1924, %v1937
      %v1939 = vcombine.low %v1915, %v1931
      %v1940 = vcombine.high %v1915, %v1931
      %v1942 = vunpack.c.l.s4 1934713408
      %v1943 = vunpack.c.0.s8 %v1942
      %v1944 = vlaneseq
      %v1945 = vshrl.u32 %v1944, 7
      %v1946 = vsub.s32 %v1943, %v1945
      %v1947 = vrot.slane %v1939, %v1946
      %v1949 = vunpack.c.l.s4 1934713408
      %v1950 = vunpack.c.0.s8 %v1949
      %v1951 = vlaneseq
      %v1952 = vshrl.u32 %v1951, 7
      %v1953 = vsub.s32 %v1950, %v1952
      %v1954 = vrot.slane %v1940, %v1953
      %v1955 = vcombine.low %v1922, %v1938
      %v1956 = vcombine.high %v1922, %v1938
      %v1958 = vunpack.c.l.s4 1934713408
      %v1959 = vunpack.c.0.s8 %v1958
      %v1960 = vlaneseq
      %v1961 = vshrl.u32 %v1960, 7
      %v1962 = vsub.s32 %v1959, %v1961
      %v1963 = vrot.slane %v1955, %v1962
      %v1965 = vunpack.c.l.s4 1934713408
      %v1966 = vunpack.c.0.s8 %v1965
      %v1967 = vlaneseq
      %v1968 = vshrl.u32 %v1967, 7
      %v1969 = vsub.s32 %v1966, %v1968
      %v1970 = vrot.slane %v1956, %v1969
      %v1971 = vcombine.high %v1947, 0.0
      %v1972 = vcombine.high %v1954, 0.0
      %v1973 = vcombine.high %v1963, 0.0
      %v1974 = vcombine.high %v1970, 0.0
      %1976 = vrot.lane.b32.xlu0 %v1971, 8
      %v1977 = vpop.permute.xlu0 %1976
      %1980 = vrot.lane.b32.xlu0 %v1954, 16
      %v1981 = vpop.permute.xlu0 %1980
      %1984 = vrot.lane.b32.xlu0 %v1972, 24
      %v1985 = vpop.permute.xlu0 %1984
      %1988 = vrot.lane.b32.xlu0 %v1963, 32
      %v1989 = vpop.permute.xlu0 %1988
      %1992 = vrot.lane.b32.xlu0 %v1973, 40
      %v1993 = vpop.permute.xlu0 %1992
      %1996 = vrot.lane.b32.xlu0 %v1970, 48
      %v1997 = vpop.permute.xlu0 %1996
      %2000 = vrot.lane.b32.xlu0 %v1974, 56
      %v2001 = vpop.permute.xlu0 %2000
      %v2003 = vsel %vm321, %v1947, %v1977
      %v2004 = vsel %vm323, %v2003, %v1981
      %v2005 = vsel %vm325, %v2004, %v1985
      %v2006 = vsel %vm327, %v2005, %v1989
      %v2007 = vsel %vm329, %v2006, %v1993
      %v2008 = vsel %vm331, %v2007, %v1997
      %v2009 = vsel %vm333, %v2008, %v2001
      %s2010 = scalar_lea.vmem %s1, 128
      %v2011 = vld [vmem:[%s2010] sm:$0xff]
      %v2012 = vld [vmem:[%s2010 + $0x8] sm:$0xf]
      %v2014 = vsel %vm557, %v2011, 0
      %v2017 = vsel %vm557, %v2012, 0
      %v2020 = vsel %vm564, %v2009, 0
      %2022 = vmatprep.subr.mxu0 0.0
      %2023 = vmatpush1.msra.mxu0 0.0
      %2024 = vmatprep.subr.mxu0 0.0
      %2025 = vmatpush1.msra.mxu0 0.0
      %2026 = vmatprep.subr.mxu0 0.0
      %2027 = vmatpush1.msra.mxu0 0.0
      %2028 = vmatprep.subr.mxu0 0.0
      %2029 = vmatpush1.msra.mxu0 0.0
      %2030 = vmatprep.subr.mxu0 0.0
      %2031 = vmatpush1.msra.mxu0 0.0
      %2032 = vmatprep.subr.mxu0 0.0
      %2033 = vmatpush1.msra.mxu0 0.0
      %2034 = vmatprep.subr.mxu0 0.0
      %2035 = vmatpush1.msra.mxu0 0.0
      %2036 = vmatprep.subr.mxu0 0.0
      %2037 = vmatpush1.msra.mxu0 0.0
      %2038 = vmatprep.subr.mxu0 0.0
      %2039 = vmatpush1.msra.mxu0 0.0
      %2040 = vmatprep.subr.mxu0 0.0
      %2041 = vmatpush1.msra.mxu0 0.0
      %2042 = vmatprep.subr.mxu0 0.0
      %2043 = vmatpush1.msra.mxu0 0.0
      %2044 = vmatprep.subr.mxu0 0.0
      %2045 = vmatpush1.msra.mxu0 0.0
      %2046 = vmatprep.subr.mxu0 0.0
      %2047 = vmatpush1.msra.mxu0 0.0
      %2048 = vmatprep.subr.mxu0 0.0
      %2049 = vmatpush1.msra.mxu0 0.0
      %2050 = vmatprep.subr.mxu0 0.0
      %2051 = vmatpush1.msra.mxu0 0.0
      %2052 = vmatprep.subr.mxu0 0.0
      %2053 = vmatpush1.msra.mxu0 %v2020
      %2054 = vmatprep.subr.mxu0 0.0
      %2055 = vmatpush2.msra.mxu0 0.0
      %2056 = vmatprep.subr.mxu0 0.0
      %2057 = vmatpush2.msra.mxu0 0.0
      %2058 = vmatprep.subr.mxu0 0.0
      %2059 = vmatpush2.msra.mxu0 0.0
      %2060 = vmatprep.subr.mxu0 0.0
      %2061 = vmatpush2.msra.mxu0 0.0
      %2062 = vmatprep.subr.mxu0 0.0
      %2063 = vmatpush2.msra.mxu0 0.0
      %2064 = vmatprep.subr.mxu0 0.0
      %2065 = vmatpush2.msra.mxu0 0.0
      %2066 = vmatprep.subr.mxu0 0.0
      %2067 = vmatpush2.msra.mxu0 0.0
      %2068 = vmatprep.subr.mxu0 0.0
      %2069 = vmatpush2.msra.mxu0 0.0
      %2070 = vmatprep.subr.mxu0 0.0
      %2071 = vmatpush2.msra.mxu0 0.0
      %2072 = vmatprep.subr.mxu0 0.0
      %2073 = vmatpush2.msra.mxu0 0.0
      %2074 = vmatprep.subr.mxu0 0.0
      %2075 = vmatpush2.msra.mxu0 0.0
      %2076 = vmatprep.subr.mxu0 0.0
      %2077 = vmatpush2.msra.mxu0 0.0
      %2078 = vmatprep.subr.mxu0 0.0
      %2079 = vmatpush2.msra.mxu0 0.0
      %2080 = vmatprep.subr.mxu0 0.0
      %2081 = vmatpush2.msra.mxu0 0.0
      %2082 = vmatprep.subr.mxu0 0.0
      %2083 = vmatpush2.msra.mxu0 0.0
      %2084 = vmatprep.subr.mxu0 0.0
      %2085 = vmatpush2.msra.mxu0 0.0
      %2086 = vmatprep.mubr.f32.mxu0 0.0
      %2087 = vmatmul.mubr.f32.gmra.mxu0 %v2014
      %v2088 = vpop.f32.mrf.mxu0
      %v2089 = vadd.f32 0.0, %v2088
      %v2090 = vpop.f32.mrf.mxu0
      %2091 = vmatprep.mubr.f32.mxu0 0.0
      %2092 = vmatmul.mubr.f32.gmra.mxu0 %v2017
      %v2093 = vpop.f32.mrf.mxu0
      %v2094 = vadd.f32 0.0, %v2093
      %v2095 = vpop.f32.mrf.mxu0
      %2096 = vdwg.mxu0
      %v2097 = vadd.f32 %v1905, %v2089
      %v2098 = vadd.f32 %v1906, %v2094
      %p2099 = scmp.eq.s32.totalorder %s18, 0
      // Predicated region
      $region29: #{tpu_custom_call.1} parent=27 // pred_check
        %p2100 = pneg %p2099
      $region30: #{tpu_custom_call.1} parent=27 // pred_check_branch
        %2102 = sbr.rel (%p2100) target = $region32
      $region31: #{tpu_custom_call.1} parent=27 // pred_region
        %vm2103 = vcmask 15360
        %2104 = vst.msk [vmem:[%s155] sm:$0xff] %vm2103, 0.0
        %2105 = vst.msk [vmem:[%s155 + $0x8] sm:$0xff] %vm2103, 0.0
      $region32: #{tpu_custom_call.1} parent=27 // pred_fallthru
        _
      %vm2106 = vcmask 519168
      %v2107 = vsel %vm2106, %v334, 0.0
      %2108 = vadd.xlane.f32.xlu0 %v2107
      %v2109 = vpop.xlane.xlu0 %2108
      %vm2110 = vcmask 523264
      %v2111 = vsel %vm2110, %v2097, 0.0
      %2112 = vadd.xlane.f32.xlu0 %v2111
      %v2113 = vpop.xlane.xlu0 %2112
      %v2114 = vsel %vm2106, %v2098, 0.0
      %2115 = vadd.xlane.f32.xlu0 %v2114
      %v2116 = vpop.xlane.xlu0 %2115
      %v2119 = vrot.slane %v2113, 4
      %v2120 = vrot.slane %v2116, 4
      %v2121 = vsel %vm564, %v2119, %v2120
      %v2124 = vsel %vm564, %v2109, %v2119
      %v2125 = vmul.f32 %v334, %v334
      %v2126 = vsel %vm2106, %v2125, 0.0
      %2127 = vadd.xlane.f32.xlu0 %v2126
      %v2128 = vpop.xlane.xlu0 %2127
      %v2129 = vmul.f32 %v2097, %v2097
      %v2130 = vmul.f32 %v2098, %v2098
      %v2131 = vsel %vm2110, %v2129, 0.0
      %2132 = vadd.xlane.f32.xlu0 %v2131
      %v2133 = vpop.xlane.xlu0 %2132
      %v2134 = vsel %vm2106, %v2130, 0.0
      %2135 = vadd.xlane.f32.xlu0 %v2134
      %v2136 = vpop.xlane.xlu0 %2135
      %v2139 = vrot.slane %v2133, 4
      %v2140 = vrot.slane %v2136, 4
      %v2141 = vsel %vm564, %v2139, %v2140
      %v2143 = vsel %vm564, %v2128, %v2139
      %v2144 = vld [vmem:[%s155] sm:$0xff]
      %v2145 = vld [vmem:[%s155 + $0x8] sm:$0xff]
      %2147 = vrot.lane.b32.xlu0 %v2143, 1
      %v2148 = vpop.permute.xlu0 %2147
      %2149 = vrot.lane.b32.xlu0 %v2141, 1
      %v2150 = vpop.permute.xlu0 %2149
      %vm2153 = vcmask 7168
      %v2154 = vsel %vm2153, %v2124, %v2148
      %v2155 = vsel %vm2153, %v2121, %v2150
      %v2156 = vadd.f32 %v2144, %v2154
      %v2157 = vadd.f32 %v2145, %v2155
      %vm2158 = vcmask 15360
      %2159 = vst.msk [vmem:[%s155] sm:$0xff] %vm2158, %v2156
      %2160 = vst.msk [vmem:[%s155 + $0x8] sm:$0xff] %vm2158, %v2157
      %p2161 = scmp.lt.s32.totalorder %s17, 1
      %s2162 = scalar_select %p2161, %s17, 1
      %s2163 = smul.addr %s2162, 2
      %s2164 = smul.addr %s2163, 8
      %s2165 = scalar_lea.vmem %s2, %s2164
      // Predicated region
      $region33: #{tpu_custom_call.1} parent=27 // pred_check
        %p2166 = pneg %p90
      $region34: #{tpu_custom_call.1} parent=27 // pred_check_branch
        %2168 = sbr.rel (%p2166) target = $region36
      $region35: #{tpu_custom_call.1} parent=27 // pred_region
        _
      $region36: #{tpu_custom_call.1} parent=27 // pred_fallthru
        _
    $region28: #{tpu_custom_call.1} parent=5 // pred_fallthru
      _
    %p2169 = scmp.le.s32.totalorder 2, %s8
    // Predicated region
    $region37: #{tpu_custom_call.1} parent=5 // pred_check
      %p2170 = pneg %p2169
    $region38: #{tpu_custom_call.1} parent=5 // pred_check_branch
      %2172 = sbr.rel (%p2170) target = $region40
    $region39: #{tpu_custom_call.1} parent=5 // pred_region
      %s2173 = ssub.s32 %s8, 2
      // Predicated region
      $region41: #{tpu_custom_call.1} parent=39 // pred_check
        %p2174 = pneg %p96
      $region42: #{tpu_custom_call.1} parent=39 // pred_check_branch
        %2176 = sbr.rel (%p2174) target = $region44
      $region43: #{tpu_custom_call.1} parent=39 // pred_region
        %p2177 = scmp.lt.s32.totalorder %s19, 1
        %s2178 = scalar_select %p2177, %s19, 1
        %s2179 = smul.addr %s2178, 2
        %s2180 = smul.addr %s2179, 8
        %s2181 = scalar_lea.vmem %s2, %s2180
      $region44: #{tpu_custom_call.1} parent=39 // pred_fallthru
        _
    $region40: #{tpu_custom_call.1} parent=5 // pred_fallthru
      _
  $region6: #{tpu_custom_call.1} parent=0 // loop_footer
    %s12 = sadd.s32 1, %s8
  $region7: #{tpu_custom_call.1} parent=0 // loop_footer_branch
    %7 = sbr.rel target = $region3
  $region8: #{tpu_custom_call.1} parent=0 // loop_exit
    _

</llo_original>
